<compile_context>
chip_gen: v7x
topology: tpu7x:2x2x1
jax: 0.10.0
libtpu: 0.0.40
codegen_flags: <defaults>
</compile_context>

<pallas_src>
import functools

import jax
import jax.numpy as jnp
from jax import lax
from jax.experimental import pallas as pl
from jax.experimental.pallas import tpu as pltpu


H_PAD = 128   # hidden padded 64 -> 128: each gate slice is one full 128-lane block
C_PAD = 128   # num_classes padded 2 -> 128: output store is lane-dense


def lstm_net_kernel(idx_ref, emb_ref, wih_ref, whh_ref, b_ref,
                    fc1w_ref, fc1b_ref, fc2w_ref, fc2b_ref,
                    out_ref, *, seq_len, batch):
    """Whole forward pass, single grid point, everything resident in VMEM.

    idx_ref  : (seq_len*batch, 1)  i32  token ids (time-major, row t*batch + b)
    emb_ref  : (vocab, E)          f32  embedding table
    wih_ref  : (E, 4*Hp)           f32  input->gates  [i|f|o|g], padded
    whh_ref  : (Hp, 4*Hp)          f32  hidden->gates [i|f|o|g], padded
    b_ref    : (1, 4*Hp)           f32  combined gate bias, padded
    fc1w_ref : (Hp, Hp)   fc1b_ref: (1, Hp)
    fc2w_ref : (Hp, Cp)   fc2b_ref: (1, Cp)
    out_ref  : (batch, Cp)         f32  padded logits (real classes in [:, :C])
    """
    vocab = emb_ref.shape[0]
    Hp = whh_ref.shape[0]

    # (1) Embedding "gather" as a one-hot matmul on the MXU -- fully static,
    #     no SMEM scalar reads, no dynamic sublane slicing, no scratch.
    onehot = (idx_ref[...] ==
              lax.broadcasted_iota(jnp.int32, (seq_len * batch, vocab), 1)
              ).astype(jnp.float32)                                    # (T*B, V)
    x_emb = jnp.dot(onehot, emb_ref[...],
                    preferred_element_type=jnp.float32)                # (T*B, E)

    # (2) Input projection for ALL timesteps hoisted off the recurrence:
    #     only h @ W_hh remains on the serial h-chain.
    gx_all = (jnp.dot(x_emb, wih_ref[...], preferred_element_type=jnp.float32)
              + b_ref[...])                                            # (T*B, 4*Hp)

    # (3) Fully unrolled recurrence (seq_len is small & static) -> straight-line
    #     trace so EUP transcendentals, VPU elementwise and the next step's MXU
    #     push can overlap.
    h = jnp.zeros((batch, Hp), jnp.float32)
    c = jnp.zeros((batch, Hp), jnp.float32)
    for t in range(seq_len):
        gx = gx_all[t * batch:(t + 1) * batch, :]                      # (batch, 4*Hp)
        z = gx + jnp.dot(h, whh_ref[...], preferred_element_type=jnp.float32)
        sig = jax.nn.sigmoid(z[:, 0:3 * Hp])                           # one op over [i|f|o]
        i_g = sig[:, 0 * Hp:1 * Hp]
        f_g = sig[:, 1 * Hp:2 * Hp]
        o_g = sig[:, 2 * Hp:3 * Hp]
        g_g = jnp.tanh(z[:, 3 * Hp:4 * Hp])                            # [g]
        c = f_g * c + i_g * g_g
        h = o_g * jnp.tanh(c)

    # (4) Classification head: fc1 -> ReLU -> fc2, lane-dense padded output.
    hid = jnp.maximum(
        jnp.dot(h, fc1w_ref[...], preferred_element_type=jnp.float32)
        + fc1b_ref[...], 0.0)
    out_ref[...] = (jnp.dot(hid, fc2w_ref[...], preferred_element_type=jnp.float32)
                    + fc2b_ref[...])


def net_forward(x_idx, kernel_params, num_classes):
    """x_idx: (seq_len, batch) int32 token ids -> (batch, num_classes) f32 logits."""
    seq_len, batch = x_idx.shape
    Cp = kernel_params["fc2_w"].shape[1]

    idx_flat = x_idx.reshape(seq_len * batch, 1).astype(jnp.int32)
    vmem = pl.BlockSpec(memory_space=pltpu.MemorySpace.VMEM)
    kern = functools.partial(lstm_net_kernel, seq_len=seq_len, batch=batch)

    out_padded = pl.pallas_call(
        kern,
        out_shape=jax.ShapeDtypeStruct((batch, Cp), jnp.float32),
        in_specs=[vmem] * 9,
        out_specs=vmem,
    )(idx_flat,
      kernel_params["embedding"],
      kernel_params["w_ih"], kernel_params["w_hh"], kernel_params["b_gates"],
      kernel_params["fc1_w"], kernel_params["fc1_b"],
      kernel_params["fc2_w"], kernel_params["fc2_b"])
    return out_padded[:, :num_classes]


def init_params(key, vocab_size, embed=64, hidden=64, num_classes=2):
    """Logical (unpadded) parameters, gate order [i|f|g|o]."""
    ks = jax.random.split(key, 8)
    s = 0.1
    return {
        "embedding": s * jax.random.normal(ks[0], (vocab_size, embed), jnp.float32),
        "w_ih":      s * jax.random.normal(ks[1], (embed, 4 * hidden), jnp.float32),
        "w_hh":      s * jax.random.normal(ks[2], (hidden, 4 * hidden), jnp.float32),
        "b_gates":   s * jax.random.normal(ks[3], (1, 4 * hidden), jnp.float32),
        "fc1_w":     s * jax.random.normal(ks[4], (hidden, hidden), jnp.float32),
        "fc1_b":     s * jax.random.normal(ks[5], (1, hidden), jnp.float32),
        "fc2_w":     s * jax.random.normal(ks[6], (hidden, num_classes), jnp.float32),
        "fc2_b":     s * jax.random.normal(ks[7], (1, num_classes), jnp.float32),
    }


def _pad_to(a, shape):
    return jnp.pad(a, [(0, s - d) for d, s in zip(a.shape, shape)])


def prepare_params(params, hidden_pad=H_PAD, classes_pad=C_PAD):
    """Zero-pad hidden->Hp / classes->Cp and reorder gates [i,f,g,o] -> [i,f,o,g].

    Padding is exact: padded gate columns see zero pre-activations, so padded
    hidden/cell lanes stay 0 through the recurrence and the head; padded logit
    columns are 0 and are sliced off outside the kernel.
    """
    H = params["w_hh"].shape[0]
    Hp, Cp = hidden_pad, classes_pad

    def repack(w, row_pad=None):
        i, f, g, o = (w[..., k * H:(k + 1) * H] for k in range(4))
        blocks = [i, f, o, g]                       # sigmoid gates contiguous, tanh last
        blocks = [_pad_to(b, b.shape[:-1] + (Hp,)) for b in blocks]
        w2 = jnp.concatenate(blocks, axis=-1)
        if row_pad is not None:
            w2 = _pad_to(w2, (row_pad,) + w2.shape[1:])
        return w2

    return {
        "embedding": params["embedding"],
        "w_ih":      repack(params["w_ih"]),                 # (E, 4*Hp)
        "w_hh":      repack(params["w_hh"], row_pad=Hp),     # (Hp, 4*Hp)
        "b_gates":   repack(params["b_gates"]),              # (1, 4*Hp)
        "fc1_w":     _pad_to(params["fc1_w"], (Hp, Hp)),
        "fc1_b":     _pad_to(params["fc1_b"], (1, Hp)),
        "fc2_w":     _pad_to(params["fc2_w"], (Hp, Cp)),
        "fc2_b":     _pad_to(params["fc2_b"], (1, Cp)),
    }


def net_forward_ref(x_idx, params):
    """Pure-JAX reference with identical semantics (unpadded, gate order [i|f|g|o])."""
    hp = functools.partial(jnp.dot, precision=lax.Precision.HIGHEST)
    x_emb = jnp.take(params["embedding"], x_idx, axis=0)     # (T, B, E)
    seq_len, batch, _ = x_emb.shape
    hidden = params["w_hh"].shape[0]
    h = jnp.zeros((batch, hidden), jnp.float32)
    c = jnp.zeros((batch, hidden), jnp.float32)
    for t in range(seq_len):
        z = hp(x_emb[t], params["w_ih"]) + hp(h, params["w_hh"]) + params["b_gates"]
        i = jax.nn.sigmoid(z[:, 0 * hidden:1 * hidden])
        f = jax.nn.sigmoid(z[:, 1 * hidden:2 * hidden])
        g = jnp.tanh(z[:, 2 * hidden:3 * hidden])
        o = jax.nn.sigmoid(z[:, 3 * hidden:4 * hidden])
        c = f * c + i * g
        h = o * jnp.tanh(c)
    hid = jnp.maximum(hp(h, params["fc1_w"]) + params["fc1_b"], 0.0)
    return hp(hid, params["fc2_w"]) + params["fc2_b"]


if __name__ == "__main__":
    key = jax.random.PRNGKey(0)
    k_param, k_data = jax.random.split(key)

    vocab_size = 50          # stands in for len(X_train) + 1
    embedding_size = 64
    hidden_size = 64
    num_classes = 2
    seq_len, batch = 8, 2

    params = init_params(k_param, vocab_size, embedding_size, hidden_size, num_classes)
    kernel_params = prepare_params(params)
    x_idx = jax.random.randint(k_data, (seq_len, batch), 0, vocab_size, dtype=jnp.int32)

    logits = jax.block_until_ready(net_forward(x_idx, kernel_params, num_classes))
    ref = jax.block_until_ready(net_forward_ref(x_idx, params))

    assert logits.shape == (batch, num_classes)
    assert jnp.allclose(logits, ref, atol=1e-3, rtol=1e-3), (
        f"max abs err = {jnp.max(jnp.abs(logits - ref))}")

    print("KERNEL_OK")
</pallas_src>

<mosaic_0001>
module attributes {stable_mosaic.version = 11 : i64} {
  func.func @lstm_net_kernel(%arg0: memref<16x1xi32, #tpu.memory_space<vmem>>, %arg1: memref<50x64xf32, #tpu.memory_space<vmem>>, %arg2: memref<64x512xf32, #tpu.memory_space<vmem>>, %arg3: memref<128x512xf32, #tpu.memory_space<vmem>>, %arg4: memref<1x512xf32, #tpu.memory_space<vmem>>, %arg5: memref<128x128xf32, #tpu.memory_space<vmem>>, %arg6: memref<1x128xf32, #tpu.memory_space<vmem>>, %arg7: memref<128x128xf32, #tpu.memory_space<vmem>>, %arg8: memref<1x128xf32, #tpu.memory_space<vmem>>, %arg9: memref<2x128xf32, #tpu.memory_space<vmem>>) attributes {dimension_semantics = [], scalar_prefetch = 0 : i64, scratch_operands = 0 : i64, tpu.core_type = #tpu.core_type<tc>} {
    %c0 = arith.constant 0 : index
    %c0_0 = arith.constant 0 : index
    %0 = vector.load %arg0[%c0, %c0_0] : memref<16x1xi32, #tpu.memory_space<vmem>>, vector<16x1xi32>
    %1 = tpu.iota {dimensions = array<i32: 1>} : vector<16x50xi32>
    %2 = vector.broadcast %0 : vector<16x1xi32> to vector<16x50xi32>
    %3 = arith.cmpi eq, %2, %1 : vector<16x50xi32>
    %4 = arith.extui %3 : vector<16x50xi1> to vector<16x50xi32>
    %5 = arith.sitofp %4 : vector<16x50xi32> to vector<16x50xf32>
    %c0_1 = arith.constant 0 : index
    %c0_2 = arith.constant 0 : index
    %6 = vector.load %arg1[%c0_1, %c0_2] : memref<50x64xf32, #tpu.memory_space<vmem>>, vector<50x64xf32>
    %cst = arith.constant dense<0.000000e+00> : vector<16x64xf32>
    %7 = tpu.matmul %5, %6, %cst {dimension_numbers = #tpu.dot_dimension_numbers<[1], [0], [0], [1], [0, 0, 1, 1], [], []>} : vector<16x50xf32>, vector<50x64xf32>, vector<16x64xf32> -> vector<16x64xf32>
    %c0_3 = arith.constant 0 : index
    %c0_4 = arith.constant 0 : index
    %8 = vector.load %arg2[%c0_3, %c0_4] : memref<64x512xf32, #tpu.memory_space<vmem>>, vector<64x512xf32>
    %cst_5 = arith.constant dense<0.000000e+00> : vector<16x512xf32>
    %9 = tpu.matmul %7, %8, %cst_5 {dimension_numbers = #tpu.dot_dimension_numbers<[1], [0], [0], [1], [0, 0, 1, 1], [], []>} : vector<16x64xf32>, vector<64x512xf32>, vector<16x512xf32> -> vector<16x512xf32>
    %c0_6 = arith.constant 0 : index
    %c0_7 = arith.constant 0 : index
    %10 = vector.load %arg4[%c0_6, %c0_7] : memref<1x512xf32, #tpu.memory_space<vmem>>, vector<1x512xf32>
    %11 = vector.broadcast %10 : vector<1x512xf32> to vector<16x512xf32>
    %12 = arith.addf %9, %11 : vector<16x512xf32>
    %cst_8 = arith.constant 0.000000e+00 : f32
    %13 = vector.broadcast %cst_8 : f32 to vector<2x128xf32>
    %cst_9 = arith.constant 0.000000e+00 : f32
    %14 = vector.broadcast %cst_9 : f32 to vector<2x128xf32>
    %15 = vector.extract_strided_slice %12 {offsets = [0, 0], sizes = [2, 512], strides = [1, 1]} : vector<16x512xf32> to vector<2x512xf32>
    %c0_10 = arith.constant 0 : index
    %c0_11 = arith.constant 0 : index
    %16 = vector.load %arg3[%c0_10, %c0_11] : memref<128x512xf32, #tpu.memory_space<vmem>>, vector<128x512xf32>
    %cst_12 = arith.constant dense<0.000000e+00> : vector<2x512xf32>
    %17 = tpu.matmul %13, %16, %cst_12 {dimension_numbers = #tpu.dot_dimension_numbers<[1], [0], [0], [1], [0, 0, 1, 1], [], []>} : vector<2x128xf32>, vector<128x512xf32>, vector<2x512xf32> -> vector<2x512xf32>
    %18 = arith.addf %15, %17 : vector<2x512xf32>
    %19 = vector.extract_strided_slice %18 {offsets = [0, 0], sizes = [2, 384], strides = [1, 1]} : vector<2x512xf32> to vector<2x384xf32>
    %20 = arith.negf %19 : vector<2x384xf32>
    %21 = math.exp %20 : vector<2x384xf32>
    %cst_13 = arith.constant 1.000000e+00 : f32
    %22 = vector.broadcast %cst_13 : f32 to vector<2x384xf32>
    %23 = arith.addf %22, %21 : vector<2x384xf32>
    %24 = arith.divf %22, %23 : vector<2x384xf32>
    %25 = vector.extract_strided_slice %24 {offsets = [0, 0], sizes = [2, 128], strides = [1, 1]} : vector<2x384xf32> to vector<2x128xf32>
    %26 = vector.extract_strided_slice %24 {offsets = [0, 128], sizes = [2, 128], strides = [1, 1]} : vector<2x384xf32> to vector<2x128xf32>
    %27 = vector.extract_strided_slice %24 {offsets = [0, 256], sizes = [2, 128], strides = [1, 1]} : vector<2x384xf32> to vector<2x128xf32>
    %28 = vector.extract_strided_slice %18 {offsets = [0, 384], sizes = [2, 128], strides = [1, 1]} : vector<2x512xf32> to vector<2x128xf32>
    %29 = math.tanh %28 : vector<2x128xf32>
    %30 = arith.mulf %26, %14 : vector<2x128xf32>
    %31 = arith.mulf %25, %29 : vector<2x128xf32>
    %32 = arith.addf %30, %31 : vector<2x128xf32>
    %33 = math.tanh %32 : vector<2x128xf32>
    %34 = arith.mulf %27, %33 : vector<2x128xf32>
    %35 = vector.extract_strided_slice %12 {offsets = [2, 0], sizes = [2, 512], strides = [1, 1]} : vector<16x512xf32> to vector<2x512xf32>
    %c0_14 = arith.constant 0 : index
    %c0_15 = arith.constant 0 : index
    %36 = vector.load %arg3[%c0_14, %c0_15] : memref<128x512xf32, #tpu.memory_space<vmem>>, vector<128x512xf32>
    %cst_16 = arith.constant dense<0.000000e+00> : vector<2x512xf32>
    %37 = tpu.matmul %34, %36, %cst_16 {dimension_numbers = #tpu.dot_dimension_numbers<[1], [0], [0], [1], [0, 0, 1, 1], [], []>} : vector<2x128xf32>, vector<128x512xf32>, vector<2x512xf32> -> vector<2x512xf32>
    %38 = arith.addf %35, %37 : vector<2x512xf32>
    %39 = vector.extract_strided_slice %38 {offsets = [0, 0], sizes = [2, 384], strides = [1, 1]} : vector<2x512xf32> to vector<2x384xf32>
    %40 = arith.negf %39 : vector<2x384xf32>
    %41 = math.exp %40 : vector<2x384xf32>
    %cst_17 = arith.constant 1.000000e+00 : f32
    %42 = vector.broadcast %cst_17 : f32 to vector<2x384xf32>
    %43 = arith.addf %42, %41 : vector<2x384xf32>
    %44 = arith.divf %42, %43 : vector<2x384xf32>
    %45 = vector.extract_strided_slice %44 {offsets = [0, 0], sizes = [2, 128], strides = [1, 1]} : vector<2x384xf32> to vector<2x128xf32>
    %46 = vector.extract_strided_slice %44 {offsets = [0, 128], sizes = [2, 128], strides = [1, 1]} : vector<2x384xf32> to vector<2x128xf32>
    %47 = vector.extract_strided_slice %44 {offsets = [0, 256], sizes = [2, 128], strides = [1, 1]} : vector<2x384xf32> to vector<2x128xf32>
    %48 = vector.extract_strided_slice %38 {offsets = [0, 384], sizes = [2, 128], strides = [1, 1]} : vector<2x512xf32> to vector<2x128xf32>
    %49 = math.tanh %48 : vector<2x128xf32>
    %50 = arith.mulf %46, %32 : vector<2x128xf32>
    %51 = arith.mulf %45, %49 : vector<2x128xf32>
    %52 = arith.addf %50, %51 : vector<2x128xf32>
    %53 = math.tanh %52 : vector<2x128xf32>
    %54 = arith.mulf %47, %53 : vector<2x128xf32>
    %55 = vector.extract_strided_slice %12 {offsets = [4, 0], sizes = [2, 512], strides = [1, 1]} : vector<16x512xf32> to vector<2x512xf32>
    %c0_18 = arith.constant 0 : index
    %c0_19 = arith.constant 0 : index
    %56 = vector.load %arg3[%c0_18, %c0_19] : memref<128x512xf32, #tpu.memory_space<vmem>>, vector<128x512xf32>
    %cst_20 = arith.constant dense<0.000000e+00> : vector<2x512xf32>
    %57 = tpu.matmul %54, %56, %cst_20 {dimension_numbers = #tpu.dot_dimension_numbers<[1], [0], [0], [1], [0, 0, 1, 1], [], []>} : vector<2x128xf32>, vector<128x512xf32>, vector<2x512xf32> -> vector<2x512xf32>
    %58 = arith.addf %55, %57 : vector<2x512xf32>
    %59 = vector.extract_strided_slice %58 {offsets = [0, 0], sizes = [2, 384], strides = [1, 1]} : vector<2x512xf32> to vector<2x384xf32>
    %60 = arith.negf %59 : vector<2x384xf32>
    %61 = math.exp %60 : vector<2x384xf32>
    %cst_21 = arith.constant 1.000000e+00 : f32
    %62 = vector.broadcast %cst_21 : f32 to vector<2x384xf32>
    %63 = arith.addf %62, %61 : vector<2x384xf32>
    %64 = arith.divf %62, %63 : vector<2x384xf32>
    %65 = vector.extract_strided_slice %64 {offsets = [0, 0], sizes = [2, 128], strides = [1, 1]} : vector<2x384xf32> to vector<2x128xf32>
    %66 = vector.extract_strided_slice %64 {offsets = [0, 128], sizes = [2, 128], strides = [1, 1]} : vector<2x384xf32> to vector<2x128xf32>
    %67 = vector.extract_strided_slice %64 {offsets = [0, 256], sizes = [2, 128], strides = [1, 1]} : vector<2x384xf32> to vector<2x128xf32>
    %68 = vector.extract_strided_slice %58 {offsets = [0, 384], sizes = [2, 128], strides = [1, 1]} : vector<2x512xf32> to vector<2x128xf32>
    %69 = math.tanh %68 : vector<2x128xf32>
    %70 = arith.mulf %66, %52 : vector<2x128xf32>
    %71 = arith.mulf %65, %69 : vector<2x128xf32>
    %72 = arith.addf %70, %71 : vector<2x128xf32>
    %73 = math.tanh %72 : vector<2x128xf32>
    %74 = arith.mulf %67, %73 : vector<2x128xf32>
    %75 = vector.extract_strided_slice %12 {offsets = [6, 0], sizes = [2, 512], strides = [1, 1]} : vector<16x512xf32> to vector<2x512xf32>
    %c0_22 = arith.constant 0 : index
    %c0_23 = arith.constant 0 : index
    %76 = vector.load %arg3[%c0_22, %c0_23] : memref<128x512xf32, #tpu.memory_space<vmem>>, vector<128x512xf32>
    %cst_24 = arith.constant dense<0.000000e+00> : vector<2x512xf32>
    %77 = tpu.matmul %74, %76, %cst_24 {dimension_numbers = #tpu.dot_dimension_numbers<[1], [0], [0], [1], [0, 0, 1, 1], [], []>} : vector<2x128xf32>, vector<128x512xf32>, vector<2x512xf32> -> vector<2x512xf32>
    %78 = arith.addf %75, %77 : vector<2x512xf32>
    %79 = vector.extract_strided_slice %78 {offsets = [0, 0], sizes = [2, 384], strides = [1, 1]} : vector<2x512xf32> to vector<2x384xf32>
    %80 = arith.negf %79 : vector<2x384xf32>
    %81 = math.exp %80 : vector<2x384xf32>
    %cst_25 = arith.constant 1.000000e+00 : f32
    %82 = vector.broadcast %cst_25 : f32 to vector<2x384xf32>
    %83 = arith.addf %82, %81 : vector<2x384xf32>
    %84 = arith.divf %82, %83 : vector<2x384xf32>
    %85 = vector.extract_strided_slice %84 {offsets = [0, 0], sizes = [2, 128], strides = [1, 1]} : vector<2x384xf32> to vector<2x128xf32>
    %86 = vector.extract_strided_slice %84 {offsets = [0, 128], sizes = [2, 128], strides = [1, 1]} : vector<2x384xf32> to vector<2x128xf32>
    %87 = vector.extract_strided_slice %84 {offsets = [0, 256], sizes = [2, 128], strides = [1, 1]} : vector<2x384xf32> to vector<2x128xf32>
    %88 = vector.extract_strided_slice %78 {offsets = [0, 384], sizes = [2, 128], strides = [1, 1]} : vector<2x512xf32> to vector<2x128xf32>
    %89 = math.tanh %88 : vector<2x128xf32>
    %90 = arith.mulf %86, %72 : vector<2x128xf32>
    %91 = arith.mulf %85, %89 : vector<2x128xf32>
    %92 = arith.addf %90, %91 : vector<2x128xf32>
    %93 = math.tanh %92 : vector<2x128xf32>
    %94 = arith.mulf %87, %93 : vector<2x128xf32>
    %95 = vector.extract_strided_slice %12 {offsets = [8, 0], sizes = [2, 512], strides = [1, 1]} : vector<16x512xf32> to vector<2x512xf32>
    %c0_26 = arith.constant 0 : index
    %c0_27 = arith.constant 0 : index
    %96 = vector.load %arg3[%c0_26, %c0_27] : memref<128x512xf32, #tpu.memory_space<vmem>>, vector<128x512xf32>
    %cst_28 = arith.constant dense<0.000000e+00> : vector<2x512xf32>
    %97 = tpu.matmul %94, %96, %cst_28 {dimension_numbers = #tpu.dot_dimension_numbers<[1], [0], [0], [1], [0, 0, 1, 1], [], []>} : vector<2x128xf32>, vector<128x512xf32>, vector<2x512xf32> -> vector<2x512xf32>
    %98 = arith.addf %95, %97 : vector<2x512xf32>
    %99 = vector.extract_strided_slice %98 {offsets = [0, 0], sizes = [2, 384], strides = [1, 1]} : vector<2x512xf32> to vector<2x384xf32>
    %100 = arith.negf %99 : vector<2x384xf32>
    %101 = math.exp %100 : vector<2x384xf32>
    %cst_29 = arith.constant 1.000000e+00 : f32
    %102 = vector.broadcast %cst_29 : f32 to vector<2x384xf32>
    %103 = arith.addf %102, %101 : vector<2x384xf32>
    %104 = arith.divf %102, %103 : vector<2x384xf32>
    %105 = vector.extract_strided_slice %104 {offsets = [0, 0], sizes = [2, 128], strides = [1, 1]} : vector<2x384xf32> to vector<2x128xf32>
    %106 = vector.extract_strided_slice %104 {offsets = [0, 128], sizes = [2, 128], strides = [1, 1]} : vector<2x384xf32> to vector<2x128xf32>
    %107 = vector.extract_strided_slice %104 {offsets = [0, 256], sizes = [2, 128], strides = [1, 1]} : vector<2x384xf32> to vector<2x128xf32>
    %108 = vector.extract_strided_slice %98 {offsets = [0, 384], sizes = [2, 128], strides = [1, 1]} : vector<2x512xf32> to vector<2x128xf32>
    %109 = math.tanh %108 : vector<2x128xf32>
    %110 = arith.mulf %106, %92 : vector<2x128xf32>
    %111 = arith.mulf %105, %109 : vector<2x128xf32>
    %112 = arith.addf %110, %111 : vector<2x128xf32>
    %113 = math.tanh %112 : vector<2x128xf32>
    %114 = arith.mulf %107, %113 : vector<2x128xf32>
    %115 = vector.extract_strided_slice %12 {offsets = [10, 0], sizes = [2, 512], strides = [1, 1]} : vector<16x512xf32> to vector<2x512xf32>
    %c0_30 = arith.constant 0 : index
    %c0_31 = arith.constant 0 : index
    %116 = vector.load %arg3[%c0_30, %c0_31] : memref<128x512xf32, #tpu.memory_space<vmem>>, vector<128x512xf32>
    %cst_32 = arith.constant dense<0.000000e+00> : vector<2x512xf32>
    %117 = tpu.matmul %114, %116, %cst_32 {dimension_numbers = #tpu.dot_dimension_numbers<[1], [0], [0], [1], [0, 0, 1, 1], [], []>} : vector<2x128xf32>, vector<128x512xf32>, vector<2x512xf32> -> vector<2x512xf32>
    %118 = arith.addf %115, %117 : vector<2x512xf32>
    %119 = vector.extract_strided_slice %118 {offsets = [0, 0], sizes = [2, 384], strides = [1, 1]} : vector<2x512xf32> to vector<2x384xf32>
    %120 = arith.negf %119 : vector<2x384xf32>
    %121 = math.exp %120 : vector<2x384xf32>
    %cst_33 = arith.constant 1.000000e+00 : f32
    %122 = vector.broadcast %cst_33 : f32 to vector<2x384xf32>
    %123 = arith.addf %122, %121 : vector<2x384xf32>
    %124 = arith.divf %122, %123 : vector<2x384xf32>
    %125 = vector.extract_strided_slice %124 {offsets = [0, 0], sizes = [2, 128], strides = [1, 1]} : vector<2x384xf32> to vector<2x128xf32>
    %126 = vector.extract_strided_slice %124 {offsets = [0, 128], sizes = [2, 128], strides = [1, 1]} : vector<2x384xf32> to vector<2x128xf32>
    %127 = vector.extract_strided_slice %124 {offsets = [0, 256], sizes = [2, 128], strides = [1, 1]} : vector<2x384xf32> to vector<2x128xf32>
    %128 = vector.extract_strided_slice %118 {offsets = [0, 384], sizes = [2, 128], strides = [1, 1]} : vector<2x512xf32> to vector<2x128xf32>
    %129 = math.tanh %128 : vector<2x128xf32>
    %130 = arith.mulf %126, %112 : vector<2x128xf32>
    %131 = arith.mulf %125, %129 : vector<2x128xf32>
    %132 = arith.addf %130, %131 : vector<2x128xf32>
    %133 = math.tanh %132 : vector<2x128xf32>
    %134 = arith.mulf %127, %133 : vector<2x128xf32>
    %135 = vector.extract_strided_slice %12 {offsets = [12, 0], sizes = [2, 512], strides = [1, 1]} : vector<16x512xf32> to vector<2x512xf32>
    %c0_34 = arith.constant 0 : index
    %c0_35 = arith.constant 0 : index
    %136 = vector.load %arg3[%c0_34, %c0_35] : memref<128x512xf32, #tpu.memory_space<vmem>>, vector<128x512xf32>
    %cst_36 = arith.constant dense<0.000000e+00> : vector<2x512xf32>
    %137 = tpu.matmul %134, %136, %cst_36 {dimension_numbers = #tpu.dot_dimension_numbers<[1], [0], [0], [1], [0, 0, 1, 1], [], []>} : vector<2x128xf32>, vector<128x512xf32>, vector<2x512xf32> -> vector<2x512xf32>
    %138 = arith.addf %135, %137 : vector<2x512xf32>
    %139 = vector.extract_strided_slice %138 {offsets = [0, 0], sizes = [2, 384], strides = [1, 1]} : vector<2x512xf32> to vector<2x384xf32>
    %140 = arith.negf %139 : vector<2x384xf32>
    %141 = math.exp %140 : vector<2x384xf32>
    %cst_37 = arith.constant 1.000000e+00 : f32
    %142 = vector.broadcast %cst_37 : f32 to vector<2x384xf32>
    %143 = arith.addf %142, %141 : vector<2x384xf32>
    %144 = arith.divf %142, %143 : vector<2x384xf32>
    %145 = vector.extract_strided_slice %144 {offsets = [0, 0], sizes = [2, 128], strides = [1, 1]} : vector<2x384xf32> to vector<2x128xf32>
    %146 = vector.extract_strided_slice %144 {offsets = [0, 128], sizes = [2, 128], strides = [1, 1]} : vector<2x384xf32> to vector<2x128xf32>
    %147 = vector.extract_strided_slice %144 {offsets = [0, 256], sizes = [2, 128], strides = [1, 1]} : vector<2x384xf32> to vector<2x128xf32>
    %148 = vector.extract_strided_slice %138 {offsets = [0, 384], sizes = [2, 128], strides = [1, 1]} : vector<2x512xf32> to vector<2x128xf32>
    %149 = math.tanh %148 : vector<2x128xf32>
    %150 = arith.mulf %146, %132 : vector<2x128xf32>
    %151 = arith.mulf %145, %149 : vector<2x128xf32>
    %152 = arith.addf %150, %151 : vector<2x128xf32>
    %153 = math.tanh %152 : vector<2x128xf32>
    %154 = arith.mulf %147, %153 : vector<2x128xf32>
    %155 = vector.extract_strided_slice %12 {offsets = [14, 0], sizes = [2, 512], strides = [1, 1]} : vector<16x512xf32> to vector<2x512xf32>
    %c0_38 = arith.constant 0 : index
    %c0_39 = arith.constant 0 : index
    %156 = vector.load %arg3[%c0_38, %c0_39] : memref<128x512xf32, #tpu.memory_space<vmem>>, vector<128x512xf32>
    %cst_40 = arith.constant dense<0.000000e+00> : vector<2x512xf32>
    %157 = tpu.matmul %154, %156, %cst_40 {dimension_numbers = #tpu.dot_dimension_numbers<[1], [0], [0], [1], [0, 0, 1, 1], [], []>} : vector<2x128xf32>, vector<128x512xf32>, vector<2x512xf32> -> vector<2x512xf32>
    %158 = arith.addf %155, %157 : vector<2x512xf32>
    %159 = vector.extract_strided_slice %158 {offsets = [0, 0], sizes = [2, 384], strides = [1, 1]} : vector<2x512xf32> to vector<2x384xf32>
    %160 = arith.negf %159 : vector<2x384xf32>
    %161 = math.exp %160 : vector<2x384xf32>
    %cst_41 = arith.constant 1.000000e+00 : f32
    %162 = vector.broadcast %cst_41 : f32 to vector<2x384xf32>
    %163 = arith.addf %162, %161 : vector<2x384xf32>
    %164 = arith.divf %162, %163 : vector<2x384xf32>
    %165 = vector.extract_strided_slice %164 {offsets = [0, 0], sizes = [2, 128], strides = [1, 1]} : vector<2x384xf32> to vector<2x128xf32>
    %166 = vector.extract_strided_slice %164 {offsets = [0, 128], sizes = [2, 128], strides = [1, 1]} : vector<2x384xf32> to vector<2x128xf32>
    %167 = vector.extract_strided_slice %164 {offsets = [0, 256], sizes = [2, 128], strides = [1, 1]} : vector<2x384xf32> to vector<2x128xf32>
    %168 = vector.extract_strided_slice %158 {offsets = [0, 384], sizes = [2, 128], strides = [1, 1]} : vector<2x512xf32> to vector<2x128xf32>
    %169 = math.tanh %168 : vector<2x128xf32>
    %170 = arith.mulf %166, %152 : vector<2x128xf32>
    %171 = arith.mulf %165, %169 : vector<2x128xf32>
    %172 = arith.addf %170, %171 : vector<2x128xf32>
    %173 = math.tanh %172 : vector<2x128xf32>
    %174 = arith.mulf %167, %173 : vector<2x128xf32>
    %c0_42 = arith.constant 0 : index
    %c0_43 = arith.constant 0 : index
    %175 = vector.load %arg5[%c0_42, %c0_43] : memref<128x128xf32, #tpu.memory_space<vmem>>, vector<128x128xf32>
    %cst_44 = arith.constant dense<0.000000e+00> : vector<2x128xf32>
    %176 = tpu.matmul %174, %175, %cst_44 {dimension_numbers = #tpu.dot_dimension_numbers<[1], [0], [0], [1], [0, 0, 1, 1], [], []>} : vector<2x128xf32>, vector<128x128xf32>, vector<2x128xf32> -> vector<2x128xf32>
    %c0_45 = arith.constant 0 : index
    %c0_46 = arith.constant 0 : index
    %177 = vector.load %arg6[%c0_45, %c0_46] : memref<1x128xf32, #tpu.memory_space<vmem>>, vector<1x128xf32>
    %178 = vector.broadcast %177 : vector<1x128xf32> to vector<2x128xf32>
    %179 = arith.addf %176, %178 : vector<2x128xf32>
    %cst_47 = arith.constant 0.000000e+00 : f32
    %180 = vector.broadcast %cst_47 : f32 to vector<2x128xf32>
    %181 = arith.maximumf %179, %180 : vector<2x128xf32>
    %c0_48 = arith.constant 0 : index
    %c0_49 = arith.constant 0 : index
    %182 = vector.load %arg7[%c0_48, %c0_49] : memref<128x128xf32, #tpu.memory_space<vmem>>, vector<128x128xf32>
    %cst_50 = arith.constant dense<0.000000e+00> : vector<2x128xf32>
    %183 = tpu.matmul %181, %182, %cst_50 {dimension_numbers = #tpu.dot_dimension_numbers<[1], [0], [0], [1], [0, 0, 1, 1], [], []>} : vector<2x128xf32>, vector<128x128xf32>, vector<2x128xf32> -> vector<2x128xf32>
    %c0_51 = arith.constant 0 : index
    %c0_52 = arith.constant 0 : index
    %184 = vector.load %arg8[%c0_51, %c0_52] : memref<1x128xf32, #tpu.memory_space<vmem>>, vector<1x128xf32>
    %185 = vector.broadcast %184 : vector<1x128xf32> to vector<2x128xf32>
    %186 = arith.addf %183, %185 : vector<2x128xf32>
    %c0_53 = arith.constant 0 : index
    %c0_54 = arith.constant 0 : index
    %187 = vector.load %arg9[%c0_53, %c0_54] : memref<2x128xf32, #tpu.memory_space<vmem>>, vector<2x128xf32>
    tpu.vector_store %arg9[%c0_53, %c0_54], %186 {strides = array<i32>} : memref<2x128xf32, #tpu.memory_space<vmem>>, vector<2x128xf32>,
    return
  }
}

</mosaic_0001>

<llo_original>
// kernel: tpu_custom_call.1
$region0: #{tpu_custom_call.1}
  #allocation0 [shape = 'u32[]', space=smem, size = 0x4, offset = 0x4, fixed_abs, tag = 'smem constant byte address 0x4 - core index']
  #allocation1 [shape = 'u32[144,128]{1,0:T(1,128)}', space=vmem, size = 0x12000, scoped, tag = 'internal scratch']
  %s0 = inlined_call_operand.vmem [shape: s32[16,1], index: 0, kind: input, shape index: {}]
  %s1 = inlined_call_operand.hbm [shape: f32[50,64], index: 1, kind: input, shape index: {}]
  %s2 = inlined_call_operand.hbm [shape: f32[64,512], index: 2, kind: input, shape index: {}]
  %s3 = inlined_call_operand.hbm [shape: f32[128,512], index: 3, kind: input, shape index: {}]
  %s4 = inlined_call_operand.vmem [shape: f32[1,512], index: 4, kind: input, shape index: {}]
  %s5 = inlined_call_operand.hbm [shape: f32[128,128], index: 5, kind: input, shape index: {}]
  %s6 = inlined_call_operand.vmem [shape: f32[1,128], index: 6, kind: input, shape index: {}]
  %s7 = inlined_call_operand.hbm [shape: f32[128,128], index: 7, kind: input, shape index: {}]
  %s8 = inlined_call_operand.vmem [shape: f32[1,128], index: 8, kind: input, shape index: {}]
  %s9 = inlined_call_operand.hbm [shape: f32[2,128], index: 9, kind: output, shape index: {}]
  %s10 = sld [smem:[#allocation0]]
  $region66: #{tpu_custom_call.1} parent=0
    _
  %s12 = ssub.s32 1, %s10
  %s13 = scalar_select 0, %s12, %s10
  $region1: #{tpu_custom_call.1} parent=0
    #allocation2 [shape = 'u8[28672]{0}', space=vmem, size = 0x7000, scoped, tag = 'input window, operand 1, single buffered']
    #allocation3 [shape = 's32[1]{0}', space=sflag, size = 0x4, scoped, tag = 'scoped memory for tpu_custom_call.1']
    #allocation4 [shape = 's32[1]{0}', space=sflag, size = 0x4, scoped, tag = 'scoped memory for tpu_custom_call.1']
    #allocation5 [shape = 'u8[131072]{0}', space=vmem, size = 0x20000, scoped, tag = 'input window, operand 2, single buffered']
    #allocation6 [shape = 's32[1]{0}', space=sflag, size = 0x4, scoped, tag = 'scoped memory for tpu_custom_call.1']
    #allocation7 [shape = 'u8[262144]{0}', space=vmem, size = 0x40000, scoped, tag = 'input window, operand 3, single buffered']
    #allocation8 [shape = 'u8[65536]{0}', space=vmem, size = 0x10000, scoped, tag = 'input window, operand 5, single buffered']
    #allocation9 [shape = 's32[1]{0}', space=sflag, size = 0x4, scoped, tag = 'scoped memory for tpu_custom_call.1']
    #allocation10 [shape = 'u8[65536]{0}', space=vmem, size = 0x10000, scoped, tag = 'input window, operand 7, single buffered']
    #allocation11 [shape = 'u8[1024]{0}', space=vmem, size = 0x400, scoped, tag = 'output window, operand 0, single buffered']
    %14 = vsyncpa [#allocation3], 0
    %15 = vsyncpa [#allocation6], 0
    %16 = vsyncpa [#allocation9], 0
    %17 = vsyncpa [#allocation4], 0
    // Predicated region
    $region2: #{tpu_custom_call.1} parent=1 // pred_check
      _
    $region3: #{tpu_custom_call.1} parent=1 // pred_check_branch
      %19 = sbr.rel (0) target = $region5
    $region4: #{tpu_custom_call.1} parent=1 // pred_region
      _
    $region5: #{tpu_custom_call.1} parent=1 // pred_fallthru
      _
    // Predicated region
    $region6: #{tpu_custom_call.1} parent=1 // pred_check
      _
    $region7: #{tpu_custom_call.1} parent=1 // pred_check_branch
      %21 = sbr.rel (0) target = $region9
    $region8: #{tpu_custom_call.1} parent=1 // pred_region
      %s23 = ssub.s32 896, 896
      %24 = vsyncadd [#allocation3], %s23
      %s25 = sshll.u32 [#allocation2], 4
      %s26 = int_to_ptr.vmem [resolvable:$true] %s25
      %31 = dma.hbm_to_vmem [thread:$0]  %s1, 896, %s26, [#allocation3], 128, 128, 8
    $region9: #{tpu_custom_call.1} parent=1 // pred_fallthru
      _
    // Predicated region
    $region10: #{tpu_custom_call.1} parent=1 // pred_check
      _
    $region11: #{tpu_custom_call.1} parent=1 // pred_check_branch
      %33 = sbr.rel (0) target = $region13
    $region12: #{tpu_custom_call.1} parent=1 // pred_region
      %s35 = ssub.s32 4096, 4096
      %36 = vsyncadd [#allocation6], %s35
      %s37 = sshll.u32 [#allocation5], 4
      %s38 = int_to_ptr.vmem [resolvable:$true] %s37
      %43 = dma.hbm_to_vmem [thread:$0]  %s2, 4096, %s38, [#allocation6], 512, 512, 32
    $region13: #{tpu_custom_call.1} parent=1 // pred_fallthru
      _
    // Predicated region
    $region14: #{tpu_custom_call.1} parent=1 // pred_check
      _
    $region15: #{tpu_custom_call.1} parent=1 // pred_check_branch
      %45 = sbr.rel (0) target = $region17
    $region16: #{tpu_custom_call.1} parent=1 // pred_region
      %s47 = ssub.s32 8192, 8192
      %48 = vsyncadd [#allocation6], %s47
      %s49 = sshll.u32 [#allocation7], 4
      %s50 = int_to_ptr.vmem [resolvable:$true] %s49
      %55 = dma.hbm_to_vmem [thread:$0]  %s3, 8192, %s50, [#allocation6], 512, 512, 32
    $region17: #{tpu_custom_call.1} parent=1 // pred_fallthru
      _
    // Predicated region
    $region18: #{tpu_custom_call.1} parent=1 // pred_check
      _
    $region19: #{tpu_custom_call.1} parent=1 // pred_check_branch
      %57 = sbr.rel (0) target = $region21
    $region20: #{tpu_custom_call.1} parent=1 // pred_region
      _
    $region21: #{tpu_custom_call.1} parent=1 // pred_fallthru
      _
    // Predicated region
    $region22: #{tpu_custom_call.1} parent=1 // pred_check
      _
    $region23: #{tpu_custom_call.1} parent=1 // pred_check_branch
      %59 = sbr.rel (0) target = $region25
    $region24: #{tpu_custom_call.1} parent=1 // pred_region
      %s61 = ssub.s32 2048, 2048
      %62 = vsyncadd [#allocation9], %s61
      %s63 = sshll.u32 [#allocation8], 4
      %s64 = int_to_ptr.vmem [resolvable:$true] %s63
      %69 = dma.hbm_to_vmem [thread:$0]  %s5, 2048, %s64, [#allocation9], 128, 128, 8
    $region25: #{tpu_custom_call.1} parent=1 // pred_fallthru
      _
    // Predicated region
    $region26: #{tpu_custom_call.1} parent=1 // pred_check
      _
    $region27: #{tpu_custom_call.1} parent=1 // pred_check_branch
      %71 = sbr.rel (0) target = $region29
    $region28: #{tpu_custom_call.1} parent=1 // pred_region
      _
    $region29: #{tpu_custom_call.1} parent=1 // pred_fallthru
      _
    // Predicated region
    $region30: #{tpu_custom_call.1} parent=1 // pred_check
      _
    $region31: #{tpu_custom_call.1} parent=1 // pred_check_branch
      %73 = sbr.rel (0) target = $region33
    $region32: #{tpu_custom_call.1} parent=1 // pred_region
      %s75 = ssub.s32 2048, 2048
      %76 = vsyncadd [#allocation9], %s75
      %s77 = sshll.u32 [#allocation10], 4
      %s78 = int_to_ptr.vmem [resolvable:$true] %s77
      %83 = dma.hbm_to_vmem [thread:$0]  %s7, 2048, %s78, [#allocation9], 128, 128, 8
    $region33: #{tpu_custom_call.1} parent=1 // pred_fallthru
      _
    // Predicated region
    $region34: #{tpu_custom_call.1} parent=1 // pred_check
      _
    $region35: #{tpu_custom_call.1} parent=1 // pred_check_branch
      %85 = sbr.rel (0) target = $region37
    $region36: #{tpu_custom_call.1} parent=1 // pred_region
      _
    $region37: #{tpu_custom_call.1} parent=1 // pred_fallthru
      _
    // Predicated region
    $region38: #{tpu_custom_call.1} parent=1 // pred_check
      _
    $region39: #{tpu_custom_call.1} parent=1 // pred_check_branch
      %87 = sbr.rel (0) target = $region41
    $region40: #{tpu_custom_call.1} parent=1 // pred_region
      %88 = dma.done [#allocation3], 896
    $region41: #{tpu_custom_call.1} parent=1 // pred_fallthru
      _
    // Predicated region
    $region42: #{tpu_custom_call.1} parent=1 // pred_check
      _
    $region43: #{tpu_custom_call.1} parent=1 // pred_check_branch
      %90 = sbr.rel (0) target = $region45
    $region44: #{tpu_custom_call.1} parent=1 // pred_region
      %91 = dma.done [#allocation6], 4096
    $region45: #{tpu_custom_call.1} parent=1 // pred_fallthru
      _
    // Predicated region
    $region46: #{tpu_custom_call.1} parent=1 // pred_check
      _
    $region47: #{tpu_custom_call.1} parent=1 // pred_check_branch
      %93 = sbr.rel (0) target = $region49
    $region48: #{tpu_custom_call.1} parent=1 // pred_region
      %94 = dma.done [#allocation6], 8192
    $region49: #{tpu_custom_call.1} parent=1 // pred_fallthru
      _
    // Predicated region
    $region50: #{tpu_custom_call.1} parent=1 // pred_check
      _
    $region51: #{tpu_custom_call.1} parent=1 // pred_check_branch
      %96 = sbr.rel (0) target = $region53
    $region52: #{tpu_custom_call.1} parent=1 // pred_region
      %97 = dma.done [#allocation9], 2048
    $region53: #{tpu_custom_call.1} parent=1 // pred_fallthru
      _
    // Predicated region
    $region54: #{tpu_custom_call.1} parent=1 // pred_check
      _
    $region55: #{tpu_custom_call.1} parent=1 // pred_check_branch
      %99 = sbr.rel (0) target = $region57
    $region56: #{tpu_custom_call.1} parent=1 // pred_region
      %100 = dma.done [#allocation9], 2048
    $region57: #{tpu_custom_call.1} parent=1 // pred_fallthru
      _
    %v101 = vld [vmem:[%s0] sm:$0xff]
    %v102 = vld [vmem:[%s0 + $0x8] sm:$0xff]
    %v103 = vlaneseq
    %v104 = vand.u32 %v103, 127
    %105 = vset.pattern.permute.xlu0 0
    %106 = vperm.xlu0 %105, %v101
    %v107 = vpop.permute.xlu0 %106
    %108 = vset.pattern.permute.xlu0 0
    %109 = vperm.xlu0 %108, %v102
    %v110 = vpop.permute.xlu0 %109
    %vm111 = vcmp.eq.s32.totalorder %v107, %v104
    %vm112 = vcmp.eq.s32.totalorder %v110, %v104
    %v113 = vsel %vm111, 1, 0
    %v114 = vsel %vm112, 1, 0
    %v115 = vcvt.s32.f32 %v113
    %v116 = vcvt.s32.f32 %v114
    %v117 = vld [vmem:[#allocation2] sm:$0xff]
    %v118 = vld [vmem:[#allocation2 + $0x8] sm:$0xff]
    %v119 = vld [vmem:[#allocation2 + $0x10] sm:$0xff]
    %v120 = vld [vmem:[#allocation2 + $0x18] sm:$0xff]
    %v121 = vld [vmem:[#allocation2 + $0x20] sm:$0xff]
    %v122 = vld [vmem:[#allocation2 + $0x28] sm:$0xff]
    %v123 = vld [vmem:[#allocation2 + $0x30] sm:$0x3]
    %vm124 = vcmask 408576
    %v126 = vsel %vm124, %v115, 0
    %v129 = vsel %vm124, %v116, 0
    %vm131 = vcmask 1041408
    %v133 = vsel %vm131, %v123, 0
    %135 = vmatprep.subr.mxu0 0.0
    %136 = vmatpush1.msra.mxu0 %v117
    %137 = vmatprep.subr.mxu0 0.0
    %138 = vmatpush1.msra.mxu0 %v118
    %139 = vmatprep.subr.mxu0 0.0
    %140 = vmatpush1.msra.mxu0 %v119
    %141 = vmatprep.subr.mxu0 0.0
    %142 = vmatpush1.msra.mxu0 %v120
    %143 = vmatprep.subr.mxu0 0.0
    %144 = vmatpush1.msra.mxu0 %v121
    %145 = vmatprep.subr.mxu0 0.0
    %146 = vmatpush1.msra.mxu0 %v122
    %147 = vmatprep.subr.mxu0 0.0
    %148 = vmatpush1.msra.mxu0 %v133
    %149 = vmatprep.subr.mxu0 0.0
    %150 = vmatpush1.msra.mxu0 0.0
    %151 = vmatprep.subr.mxu0 0.0
    %152 = vmatpush1.msra.mxu0 0.0
    %153 = vmatprep.subr.mxu0 0.0
    %154 = vmatpush1.msra.mxu0 0.0
    %155 = vmatprep.subr.mxu0 0.0
    %156 = vmatpush1.msra.mxu0 0.0
    %157 = vmatprep.subr.mxu0 0.0
    %158 = vmatpush1.msra.mxu0 0.0
    %159 = vmatprep.subr.mxu0 0.0
    %160 = vmatpush1.msra.mxu0 0.0
    %161 = vmatprep.subr.mxu0 0.0
    %162 = vmatpush1.msra.mxu0 0.0
    %163 = vmatprep.subr.mxu0 0.0
    %164 = vmatpush1.msra.mxu0 0.0
    %165 = vmatprep.subr.mxu0 0.0
    %166 = vmatpush1.msra.mxu0 0.0
    %167 = vmatprep.subr.mxu0 0.0
    %168 = vmatpush1.msra.mxu0 0.0
    %169 = vmatprep.subr.mxu0 0.0
    %170 = vmatpush1.msra.mxu0 0.0
    %171 = vmatprep.subr.mxu0 0.0
    %172 = vmatpush1.msra.mxu0 0.0
    %173 = vmatprep.subr.mxu0 0.0
    %174 = vmatpush1.msra.mxu0 0.0
    %175 = vmatprep.subr.mxu0 0.0
    %176 = vmatpush1.msra.mxu0 0.0
    %177 = vmatprep.subr.mxu0 0.0
    %178 = vmatpush1.msra.mxu0 0.0
    %179 = vmatprep.subr.mxu0 0.0
    %180 = vmatpush1.msra.mxu0 0.0
    %181 = vmatprep.subr.mxu0 0.0
    %182 = vmatpush1.msra.mxu0 0.0
    %183 = vmatprep.subr.mxu0 0.0
    %184 = vmatpush1.msra.mxu0 0.0
    %185 = vmatprep.subr.mxu0 0.0
    %186 = vmatpush1.msra.mxu0 0.0
    %187 = vmatprep.subr.mxu0 0.0
    %188 = vmatpush1.msra.mxu0 0.0
    %189 = vmatprep.subr.mxu0 0.0
    %190 = vmatpush1.msra.mxu0 0.0
    %191 = vmatprep.subr.mxu0 0.0
    %192 = vmatpush1.msra.mxu0 0.0
    %193 = vmatprep.subr.mxu0 0.0
    %194 = vmatpush1.msra.mxu0 0.0
    %195 = vmatprep.subr.mxu0 0.0
    %196 = vmatpush1.msra.mxu0 0.0
    %197 = vmatprep.subr.mxu0 0.0
    %198 = vmatpush1.msra.mxu0 0.0
    %199 = vmatprep.mubr.f32.mxu0 0.0
    %200 = vmatmul.mubr.f32.gmra.mrb[0].mxu0 %v126
    %v201 = vpop.f32.mrb[0].mxu0
    %v202 = vadd.f32 0.0, %v201
    %v203 = vpop.f32.mrb[0].mxu0
    %204 = vmatprep.mubr.f32.mxu0 0.0
    %205 = vmatmul.mubr.f32.gmra.mrb[0].mxu0 %v129
    %v206 = vpop.f32.mrb[0].mxu0
    %v207 = vadd.f32 0.0, %v206
    %v208 = vpop.f32.mrb[0].mxu0
    %209 = vdwg.mxu0
    %v210 = vld [vmem:[#allocation5] sm:$0xff]
    %v211 = vld [vmem:[#allocation5 + $0x8] sm:$0xff]
    %v212 = vld [vmem:[#allocation5 + $0x10] sm:$0xff]
    %v213 = vld [vmem:[#allocation5 + $0x18] sm:$0xff]
    %v214 = vld [vmem:[#allocation5 + $0x20] sm:$0xff]
    %v215 = vld [vmem:[#allocation5 + $0x28] sm:$0xff]
    %v216 = vld [vmem:[#allocation5 + $0x30] sm:$0xff]
    %v217 = vld [vmem:[#allocation5 + $0x38] sm:$0xff]
    %v218 = vld [vmem:[#allocation5 + $0x40] sm:$0xff]
    %v219 = vld [vmem:[#allocation5 + $0x48] sm:$0xff]
    %v220 = vld [vmem:[#allocation5 + $0x50] sm:$0xff]
    %v221 = vld [vmem:[#allocation5 + $0x58] sm:$0xff]
    %v222 = vld [vmem:[#allocation5 + $0x60] sm:$0xff]
    %v223 = vld [vmem:[#allocation5 + $0x68] sm:$0xff]
    %v224 = vld [vmem:[#allocation5 + $0x70] sm:$0xff]
    %v225 = vld [vmem:[#allocation5 + $0x78] sm:$0xff]
    %v226 = vld [vmem:[#allocation5 + $0x80] sm:$0xff]
    %v227 = vld [vmem:[#allocation5 + $0x88] sm:$0xff]
    %v228 = vld [vmem:[#allocation5 + $0x90] sm:$0xff]
    %v229 = vld [vmem:[#allocation5 + $0x98] sm:$0xff]
    %v230 = vld [vmem:[#allocation5 + $0xa0] sm:$0xff]
    %v231 = vld [vmem:[#allocation5 + $0xa8] sm:$0xff]
    %v232 = vld [vmem:[#allocation5 + $0xb0] sm:$0xff]
    %v233 = vld [vmem:[#allocation5 + $0xb8] sm:$0xff]
    %v234 = vld [vmem:[#allocation5 + $0xc0] sm:$0xff]
    %v235 = vld [vmem:[#allocation5 + $0xc8] sm:$0xff]
    %v236 = vld [vmem:[#allocation5 + $0xd0] sm:$0xff]
    %v237 = vld [vmem:[#allocation5 + $0xd8] sm:$0xff]
    %v238 = vld [vmem:[#allocation5 + $0xe0] sm:$0xff]
    %v239 = vld [vmem:[#allocation5 + $0xe8] sm:$0xff]
    %v240 = vld [vmem:[#allocation5 + $0xf0] sm:$0xff]
    %v241 = vld [vmem:[#allocation5 + $0xf8] sm:$0xff]
    %v242 = vld [vmem:[%s4] sm:$0xf]
    %v244 = vlaneseq
    %v245 = vshrl.u32 %v244, 7
    %v246 = vsub.s32 0, %v245
    %v247 = vrot.slane %v242, %v246
    %v248 = vlaneseq
    %v249 = vshrl.u32 %v248, 7
    %v250 = vsub.s32 1, %v249
    %v251 = vrot.slane %v242, %v250
    %v252 = vlaneseq
    %v253 = vshrl.u32 %v252, 7
    %v254 = vsub.s32 2, %v253
    %v255 = vrot.slane %v242, %v254
    %v256 = vlaneseq
    %v257 = vshrl.u32 %v256, 7
    %v258 = vsub.s32 3, %v257
    %v259 = vrot.slane %v242, %v258
    %vm264 = vcmask 523264
    %v266 = vsel %vm264, %v202, 0
    %v269 = vsel %vm264, %v207, 0
    %271 = vmatprep.subr.mxu0 %v211
    %272 = vmatpush1.msra.mxu0 %v210
    %273 = vmatprep.subr.mxu0 %v215
    %274 = vmatpush1.msra.mxu0 %v214
    %275 = vmatprep.subr.mxu0 %v219
    %276 = vmatpush1.msra.mxu0 %v218
    %277 = vmatprep.subr.mxu0 %v223
    %278 = vmatpush1.msra.mxu0 %v222
    %279 = vmatprep.subr.mxu0 %v227
    %280 = vmatpush1.msra.mxu0 %v226
    %281 = vmatprep.subr.mxu0 %v231
    %282 = vmatpush1.msra.mxu0 %v230
    %283 = vmatprep.subr.mxu0 %v235
    %284 = vmatpush1.msra.mxu0 %v234
    %285 = vmatprep.subr.mxu0 %v239
    %286 = vmatpush1.msra.mxu0 %v238
    %287 = vmatprep.subr.mxu0 0.0
    %288 = vmatpush1.msra.mxu0 0.0
    %289 = vmatprep.subr.mxu0 0.0
    %290 = vmatpush1.msra.mxu0 0.0
    %291 = vmatprep.subr.mxu0 0.0
    %292 = vmatpush1.msra.mxu0 0.0
    %293 = vmatprep.subr.mxu0 0.0
    %294 = vmatpush1.msra.mxu0 0.0
    %295 = vmatprep.subr.mxu0 0.0
    %296 = vmatpush1.msra.mxu0 0.0
    %297 = vmatprep.subr.mxu0 0.0
    %298 = vmatpush1.msra.mxu0 0.0
    %299 = vmatprep.subr.mxu0 0.0
    %300 = vmatpush1.msra.mxu0 0.0
    %301 = vmatprep.subr.mxu0 0.0
    %302 = vmatpush1.msra.mxu0 0.0
    %303 = vmatprep.subr.mxu0 0.0
    %304 = vmatpush1.msra.mxu0 0.0
    %305 = vmatprep.subr.mxu0 0.0
    %306 = vmatpush1.msra.mxu0 0.0
    %307 = vmatprep.subr.mxu0 0.0
    %308 = vmatpush1.msra.mxu0 0.0
    %309 = vmatprep.subr.mxu0 0.0
    %310 = vmatpush1.msra.mxu0 0.0
    %311 = vmatprep.subr.mxu0 0.0
    %312 = vmatpush1.msra.mxu0 0.0
    %313 = vmatprep.subr.mxu0 0.0
    %314 = vmatpush1.msra.mxu0 0.0
    %315 = vmatprep.subr.mxu0 0.0
    %316 = vmatpush1.msra.mxu0 0.0
    %317 = vmatprep.subr.mxu0 0.0
    %318 = vmatpush1.msra.mxu0 0.0
    %319 = vmatprep.subr.mxu0 0.0
    %320 = vmatpush1.msra.mxu0 0.0
    %321 = vmatprep.subr.mxu0 0.0
    %322 = vmatpush1.msra.mxu0 0.0
    %323 = vmatprep.subr.mxu0 0.0
    %324 = vmatpush1.msra.mxu0 0.0
    %325 = vmatprep.subr.mxu0 0.0
    %326 = vmatpush1.msra.mxu0 0.0
    %327 = vmatprep.subr.mxu0 0.0
    %328 = vmatpush1.msra.mxu0 0.0
    %329 = vmatprep.subr.mxu0 0.0
    %330 = vmatpush1.msra.mxu0 0.0
    %331 = vmatprep.subr.mxu0 0.0
    %332 = vmatpush1.msra.mxu0 0.0
    %333 = vmatprep.subr.mxu0 0.0
    %334 = vmatpush1.msra.mxu0 0.0
    %335 = vmatprep.mubr.f32.mxu0 0.0
    %336 = vmatmul.mubr.f32.gmra.mrb[0].mxu0 %v266
    %v337 = vpop.f32.mrb[0].mxu0
    %v338 = vadd.f32 %v247, %v337
    %v339 = vpop.f32.mrb[0].mxu0
    %v340 = vadd.f32 %v251, %v339
    %341 = vmatprep.mubr.f32.mxu0 0.0
    %342 = vmatmul.mubr.f32.gmra.mrb[0].mxu0 %v269
    %v343 = vpop.f32.mrb[0].mxu0
    %v344 = vadd.f32 %v247, %v343
    %v345 = vpop.f32.mrb[0].mxu0
    %v346 = vadd.f32 %v251, %v345
    %347 = vdwg.mxu0
    %348 = vmatprep.subr.mxu0 %v213
    %349 = vmatpush1.msra.mxu0 %v212
    %350 = vmatprep.subr.mxu0 %v217
    %351 = vmatpush1.msra.mxu0 %v216
    %352 = vmatprep.subr.mxu0 %v221
    %353 = vmatpush1.msra.mxu0 %v220
    %354 = vmatprep.subr.mxu0 %v225
    %355 = vmatpush1.msra.mxu0 %v224
    %356 = vmatprep.subr.mxu0 %v229
    %357 = vmatpush1.msra.mxu0 %v228
    %358 = vmatprep.subr.mxu0 %v233
    %359 = vmatpush1.msra.mxu0 %v232
    %360 = vmatprep.subr.mxu0 %v237
    %361 = vmatpush1.msra.mxu0 %v236
    %362 = vmatprep.subr.mxu0 %v241
    %363 = vmatpush1.msra.mxu0 %v240
    %364 = vmatprep.subr.mxu0 0.0
    %365 = vmatpush1.msra.mxu0 0.0
    %366 = vmatprep.subr.mxu0 0.0
    %367 = vmatpush1.msra.mxu0 0.0
    %368 = vmatprep.subr.mxu0 0.0
    %369 = vmatpush1.msra.mxu0 0.0
    %370 = vmatprep.subr.mxu0 0.0
    %371 = vmatpush1.msra.mxu0 0.0
    %372 = vmatprep.subr.mxu0 0.0
    %373 = vmatpush1.msra.mxu0 0.0
    %374 = vmatprep.subr.mxu0 0.0
    %375 = vmatpush1.msra.mxu0 0.0
    %376 = vmatprep.subr.mxu0 0.0
    %377 = vmatpush1.msra.mxu0 0.0
    %378 = vmatprep.subr.mxu0 0.0
    %379 = vmatpush1.msra.mxu0 0.0
    %380 = vmatprep.subr.mxu0 0.0
    %381 = vmatpush1.msra.mxu0 0.0
    %382 = vmatprep.subr.mxu0 0.0
    %383 = vmatpush1.msra.mxu0 0.0
    %384 = vmatprep.subr.mxu0 0.0
    %385 = vmatpush1.msra.mxu0 0.0
    %386 = vmatprep.subr.mxu0 0.0
    %387 = vmatpush1.msra.mxu0 0.0
    %388 = vmatprep.subr.mxu0 0.0
    %389 = vmatpush1.msra.mxu0 0.0
    %390 = vmatprep.subr.mxu0 0.0
    %391 = vmatpush1.msra.mxu0 0.0
    %392 = vmatprep.subr.mxu0 0.0
    %393 = vmatpush1.msra.mxu0 0.0
    %394 = vmatprep.subr.mxu0 0.0
    %395 = vmatpush1.msra.mxu0 0.0
    %396 = vmatprep.subr.mxu0 0.0
    %397 = vmatpush1.msra.mxu0 0.0
    %398 = vmatprep.subr.mxu0 0.0
    %399 = vmatpush1.msra.mxu0 0.0
    %400 = vmatprep.subr.mxu0 0.0
    %401 = vmatpush1.msra.mxu0 0.0
    %402 = vmatprep.subr.mxu0 0.0
    %403 = vmatpush1.msra.mxu0 0.0
    %404 = vmatprep.subr.mxu0 0.0
    %405 = vmatpush1.msra.mxu0 0.0
    %406 = vmatprep.subr.mxu0 0.0
    %407 = vmatpush1.msra.mxu0 0.0
    %408 = vmatprep.subr.mxu0 0.0
    %409 = vmatpush1.msra.mxu0 0.0
    %410 = vmatprep.subr.mxu0 0.0
    %411 = vmatpush1.msra.mxu0 0.0
    %412 = vmatprep.mubr.f32.mxu0 0.0
    %413 = vmatmul.mubr.f32.gmra.mrb[0].mxu0 %v266
    %v414 = vpop.f32.mrb[0].mxu0
    %v415 = vadd.f32 %v255, %v414
    %v416 = vpop.f32.mrb[0].mxu0
    %v417 = vadd.f32 %v259, %v416
    %418 = vmatprep.mubr.f32.mxu0 0.0
    %419 = vmatmul.mubr.f32.gmra.mrb[0].mxu0 %v269
    %v420 = vpop.f32.mrb[0].mxu0
    %v421 = vadd.f32 %v255, %v420
    %v422 = vpop.f32.mrb[0].mxu0
    %v423 = vadd.f32 %v259, %v422
    %424 = vdwg.mxu0
    %v425 = vld [vmem:[#allocation7] sm:$0xff]
    %v426 = vld [vmem:[#allocation7 + $0x8] sm:$0xff]
    %v427 = vld [vmem:[#allocation7 + $0x10] sm:$0xff]
    %v428 = vld [vmem:[#allocation7 + $0x18] sm:$0xff]
    %v429 = vld [vmem:[#allocation7 + $0x20] sm:$0xff]
    %v430 = vld [vmem:[#allocation7 + $0x28] sm:$0xff]
    %v431 = vld [vmem:[#allocation7 + $0x30] sm:$0xff]
    %v432 = vld [vmem:[#allocation7 + $0x38] sm:$0xff]
    %v433 = vld [vmem:[#allocation7 + $0x40] sm:$0xff]
    %v434 = vld [vmem:[#allocation7 + $0x48] sm:$0xff]
    %v435 = vld [vmem:[#allocation7 + $0x50] sm:$0xff]
    %v436 = vld [vmem:[#allocation7 + $0x58] sm:$0xff]
    %v437 = vld [vmem:[#allocation7 + $0x60] sm:$0xff]
    %v438 = vld [vmem:[#allocation7 + $0x68] sm:$0xff]
    %v439 = vld [vmem:[#allocation7 + $0x70] sm:$0xff]
    %v440 = vld [vmem:[#allocation7 + $0x78] sm:$0xff]
    %v441 = vld [vmem:[#allocation7 + $0x80] sm:$0xff]
    %v442 = vld [vmem:[#allocation7 + $0x88] sm:$0xff]
    %v443 = vld [vmem:[#allocation7 + $0x90] sm:$0xff]
    %v444 = vld [vmem:[#allocation7 + $0x98] sm:$0xff]
    %v445 = vld [vmem:[#allocation7 + $0xa0] sm:$0xff]
    %v446 = vld [vmem:[#allocation7 + $0xa8] sm:$0xff]
    %v447 = vld [vmem:[#allocation7 + $0xb0] sm:$0xff]
    %v448 = vld [vmem:[#allocation7 + $0xb8] sm:$0xff]
    %v449 = vld [vmem:[#allocation7 + $0xc0] sm:$0xff]
    %v450 = vld [vmem:[#allocation7 + $0xc8] sm:$0xff]
    %v451 = vld [vmem:[#allocation7 + $0xd0] sm:$0xff]
    %v452 = vld [vmem:[#allocation7 + $0xd8] sm:$0xff]
    %v453 = vld [vmem:[#allocation7 + $0xe0] sm:$0xff]
    %v454 = vld [vmem:[#allocation7 + $0xe8] sm:$0xff]
    %v455 = vld [vmem:[#allocation7 + $0xf0] sm:$0xff]
    %v456 = vld [vmem:[#allocation7 + $0xf8] sm:$0xff]
    %v457 = vld [vmem:[#allocation7 + $0x100] sm:$0xff]
    %v458 = vld [vmem:[#allocation7 + $0x108] sm:$0xff]
    %v459 = vld [vmem:[#allocation7 + $0x110] sm:$0xff]
    %v460 = vld [vmem:[#allocation7 + $0x118] sm:$0xff]
    %v461 = vld [vmem:[#allocation7 + $0x120] sm:$0xff]
    %v462 = vld [vmem:[#allocation7 + $0x128] sm:$0xff]
    %v463 = vld [vmem:[#allocation7 + $0x130] sm:$0xff]
    %v464 = vld [vmem:[#allocation7 + $0x138] sm:$0xff]
    %v465 = vld [vmem:[#allocation7 + $0x140] sm:$0xff]
    %v466 = vld [vmem:[#allocation7 + $0x148] sm:$0xff]
    %v467 = vld [vmem:[#allocation7 + $0x150] sm:$0xff]
    %v468 = vld [vmem:[#allocation7 + $0x158] sm:$0xff]
    %v469 = vld [vmem:[#allocation7 + $0x160] sm:$0xff]
    %v470 = vld [vmem:[#allocation7 + $0x168] sm:$0xff]
    %v471 = vld [vmem:[#allocation7 + $0x170] sm:$0xff]
    %v472 = vld [vmem:[#allocation7 + $0x178] sm:$0xff]
    %v473 = vld [vmem:[#allocation7 + $0x180] sm:$0xff]
    %v474 = vld [vmem:[#allocation7 + $0x188] sm:$0xff]
    %v475 = vld [vmem:[#allocation7 + $0x190] sm:$0xff]
    %v476 = vld [vmem:[#allocation7 + $0x198] sm:$0xff]
    %v477 = vld [vmem:[#allocation7 + $0x1a0] sm:$0xff]
    %v478 = vld [vmem:[#allocation7 + $0x1a8] sm:$0xff]
    %v479 = vld [vmem:[#allocation7 + $0x1b0] sm:$0xff]
    %v480 = vld [vmem:[#allocation7 + $0x1b8] sm:$0xff]
    %v481 = vld [vmem:[#allocation7 + $0x1c0] sm:$0xff]
    %v482 = vld [vmem:[#allocation7 + $0x1c8] sm:$0xff]
    %v483 = vld [vmem:[#allocation7 + $0x1d0] sm:$0xff]
    %v484 = vld [vmem:[#allocation7 + $0x1d8] sm:$0xff]
    %v485 = vld [vmem:[#allocation7 + $0x1e0] sm:$0xff]
    %v486 = vld [vmem:[#allocation7 + $0x1e8] sm:$0xff]
    %v487 = vld [vmem:[#allocation7 + $0x1f0] sm:$0xff]
    %v488 = vld [vmem:[#allocation7 + $0x1f8] sm:$0xff]
    %489 = vmatprep.subr.mxu0 %v426
    %490 = vmatpush1.msra.mxu0 %v425
    %491 = vmatprep.subr.mxu0 %v430
    %492 = vmatpush1.msra.mxu0 %v429
    %493 = vmatprep.subr.mxu0 %v434
    %494 = vmatpush1.msra.mxu0 %v433
    %495 = vmatprep.subr.mxu0 %v438
    %496 = vmatpush1.msra.mxu0 %v437
    %497 = vmatprep.subr.mxu0 %v442
    %498 = vmatpush1.msra.mxu0 %v441
    %499 = vmatprep.subr.mxu0 %v446
    %500 = vmatpush1.msra.mxu0 %v445
    %501 = vmatprep.subr.mxu0 %v450
    %502 = vmatpush1.msra.mxu0 %v449
    %503 = vmatprep.subr.mxu0 %v454
    %504 = vmatpush1.msra.mxu0 %v453
    %505 = vmatprep.subr.mxu0 %v458
    %506 = vmatpush1.msra.mxu0 %v457
    %507 = vmatprep.subr.mxu0 %v462
    %508 = vmatpush1.msra.mxu0 %v461
    %509 = vmatprep.subr.mxu0 %v466
    %510 = vmatpush1.msra.mxu0 %v465
    %511 = vmatprep.subr.mxu0 %v470
    %512 = vmatpush1.msra.mxu0 %v469
    %513 = vmatprep.subr.mxu0 %v474
    %514 = vmatpush1.msra.mxu0 %v473
    %515 = vmatprep.subr.mxu0 %v478
    %516 = vmatpush1.msra.mxu0 %v477
    %517 = vmatprep.subr.mxu0 %v482
    %518 = vmatpush1.msra.mxu0 %v481
    %519 = vmatprep.subr.mxu0 %v486
    %520 = vmatpush1.msra.mxu0 %v485
    %521 = vmatprep.subr.mxu0 0.0
    %522 = vmatpush1.msra.mxu0 0.0
    %523 = vmatprep.subr.mxu0 0.0
    %524 = vmatpush1.msra.mxu0 0.0
    %525 = vmatprep.subr.mxu0 0.0
    %526 = vmatpush1.msra.mxu0 0.0
    %527 = vmatprep.subr.mxu0 0.0
    %528 = vmatpush1.msra.mxu0 0.0
    %529 = vmatprep.subr.mxu0 0.0
    %530 = vmatpush1.msra.mxu0 0.0
    %531 = vmatprep.subr.mxu0 0.0
    %532 = vmatpush1.msra.mxu0 0.0
    %533 = vmatprep.subr.mxu0 0.0
    %534 = vmatpush1.msra.mxu0 0.0
    %535 = vmatprep.subr.mxu0 0.0
    %536 = vmatpush1.msra.mxu0 0.0
    %537 = vmatprep.subr.mxu0 0.0
    %538 = vmatpush1.msra.mxu0 0.0
    %539 = vmatprep.subr.mxu0 0.0
    %540 = vmatpush1.msra.mxu0 0.0
    %541 = vmatprep.subr.mxu0 0.0
    %542 = vmatpush1.msra.mxu0 0.0
    %543 = vmatprep.subr.mxu0 0.0
    %544 = vmatpush1.msra.mxu0 0.0
    %545 = vmatprep.subr.mxu0 0.0
    %546 = vmatpush1.msra.mxu0 0.0
    %547 = vmatprep.subr.mxu0 0.0
    %548 = vmatpush1.msra.mxu0 0.0
    %549 = vmatprep.subr.mxu0 0.0
    %550 = vmatpush1.msra.mxu0 0.0
    %551 = vmatprep.subr.mxu0 0.0
    %552 = vmatpush1.msra.mxu0 0.0
    %553 = vmatprep.mubr.f32.mxu0 0.0
    %554 = vmatmul.mubr.f32.gmra.mrb[0].mxu0 0.0
    %v555 = vpop.f32.mrb[0].mxu0
    %v556 = vadd.f32 0.0, %v555
    %v557 = vpop.f32.mrb[0].mxu0
    %v558 = vadd.f32 0.0, %v557
    %559 = vdwg.mxu0
    %560 = vmatprep.subr.mxu0 %v428
    %561 = vmatpush1.msra.mxu0 %v427
    %562 = vmatprep.subr.mxu0 %v432
    %563 = vmatpush1.msra.mxu0 %v431
    %564 = vmatprep.subr.mxu0 %v436
    %565 = vmatpush1.msra.mxu0 %v435
    %566 = vmatprep.subr.mxu0 %v440
    %567 = vmatpush1.msra.mxu0 %v439
    %568 = vmatprep.subr.mxu0 %v444
    %569 = vmatpush1.msra.mxu0 %v443
    %570 = vmatprep.subr.mxu0 %v448
    %571 = vmatpush1.msra.mxu0 %v447
    %572 = vmatprep.subr.mxu0 %v452
    %573 = vmatpush1.msra.mxu0 %v451
    %574 = vmatprep.subr.mxu0 %v456
    %575 = vmatpush1.msra.mxu0 %v455
    %576 = vmatprep.subr.mxu0 %v460
    %577 = vmatpush1.msra.mxu0 %v459
    %578 = vmatprep.subr.mxu0 %v464
    %579 = vmatpush1.msra.mxu0 %v463
    %580 = vmatprep.subr.mxu0 %v468
    %581 = vmatpush1.msra.mxu0 %v467
    %582 = vmatprep.subr.mxu0 %v472
    %583 = vmatpush1.msra.mxu0 %v471
    %584 = vmatprep.subr.mxu0 %v476
    %585 = vmatpush1.msra.mxu0 %v475
    %586 = vmatprep.subr.mxu0 %v480
    %587 = vmatpush1.msra.mxu0 %v479
    %588 = vmatprep.subr.mxu0 %v484
    %589 = vmatpush1.msra.mxu0 %v483
    %590 = vmatprep.subr.mxu0 %v488
    %591 = vmatpush1.msra.mxu0 %v487
    %592 = vmatprep.subr.mxu0 0.0
    %593 = vmatpush1.msra.mxu0 0.0
    %594 = vmatprep.subr.mxu0 0.0
    %595 = vmatpush1.msra.mxu0 0.0
    %596 = vmatprep.subr.mxu0 0.0
    %597 = vmatpush1.msra.mxu0 0.0
    %598 = vmatprep.subr.mxu0 0.0
    %599 = vmatpush1.msra.mxu0 0.0
    %600 = vmatprep.subr.mxu0 0.0
    %601 = vmatpush1.msra.mxu0 0.0
    %602 = vmatprep.subr.mxu0 0.0
    %603 = vmatpush1.msra.mxu0 0.0
    %604 = vmatprep.subr.mxu0 0.0
    %605 = vmatpush1.msra.mxu0 0.0
    %606 = vmatprep.subr.mxu0 0.0
    %607 = vmatpush1.msra.mxu0 0.0
    %608 = vmatprep.subr.mxu0 0.0
    %609 = vmatpush1.msra.mxu0 0.0
    %610 = vmatprep.subr.mxu0 0.0
    %611 = vmatpush1.msra.mxu0 0.0
    %612 = vmatprep.subr.mxu0 0.0
    %613 = vmatpush1.msra.mxu0 0.0
    %614 = vmatprep.subr.mxu0 0.0
    %615 = vmatpush1.msra.mxu0 0.0
    %616 = vmatprep.subr.mxu0 0.0
    %617 = vmatpush1.msra.mxu0 0.0
    %618 = vmatprep.subr.mxu0 0.0
    %619 = vmatpush1.msra.mxu0 0.0
    %620 = vmatprep.subr.mxu0 0.0
    %621 = vmatpush1.msra.mxu0 0.0
    %622 = vmatprep.subr.mxu0 0.0
    %623 = vmatpush1.msra.mxu0 0.0
    %624 = vmatprep.mubr.f32.mxu0 0.0
    %625 = vmatmul.mubr.f32.gmra.mrb[0].mxu0 0.0
    %v626 = vpop.f32.mrb[0].mxu0
    %v627 = vadd.f32 0.0, %v626
    %v628 = vpop.f32.mrb[0].mxu0
    %v629 = vadd.f32 0.0, %v628
    %630 = vdwg.mxu0
    %v631 = vadd.f32 %v338, %v556
    %v632 = vadd.f32 %v340, %v558
    %v633 = vadd.f32 %v415, %v627
    %v634 = vadd.f32 %v417, %v629
    %v635 = vxor.u32 %v631, 2147483648
    %v636 = vxor.u32 %v632, 2147483648
    %v637 = vxor.u32 %v633, 2147483648
    %v638 = vmul.f32 %v635, 1.442695
    %v639 = vpow.pop %v638
    %v640 = vmul.f32 %v636, 1.442695
    %v641 = vpow.pop %v640
    %v642 = vmul.f32 %v637, 1.442695
    %v643 = vpow.pop %v642
    %v644 = vadd.f32 %v639, 1.0
    %v645 = vadd.f32 %v641, 1.0
    %v646 = vadd.f32 %v643, 1.0
    %v647 = vrcp.pop %v644
    %v648 = vmul.f32 1.0, %v647
    %v649 = vrcp.pop %v645
    %v650 = vmul.f32 1.0, %v649
    %v651 = vrcp.pop %v646
    %v652 = vmul.f32 1.0, %v651
    %v653 = vtanh.pop %v634
    %v654 = vmul.f32 %v650, 0.0
    %v655 = vmul.f32 %v648, %v653
    %v656 = vadd.f32 %v654, %v655
    %v657 = vtanh.pop %v656
    %v658 = vmul.f32 %v652, %v657
    %659 = vmatprep.subr.mxu0 %v426
    %660 = vmatpush1.msra.mxu0 %v425
    %661 = vmatprep.subr.mxu0 %v430
    %662 = vmatpush1.msra.mxu0 %v429
    %663 = vmatprep.subr.mxu0 %v434
    %664 = vmatpush1.msra.mxu0 %v433
    %665 = vmatprep.subr.mxu0 %v438
    %666 = vmatpush1.msra.mxu0 %v437
    %667 = vmatprep.subr.mxu0 %v442
    %668 = vmatpush1.msra.mxu0 %v441
    %669 = vmatprep.subr.mxu0 %v446
    %670 = vmatpush1.msra.mxu0 %v445
    %671 = vmatprep.subr.mxu0 %v450
    %672 = vmatpush1.msra.mxu0 %v449
    %673 = vmatprep.subr.mxu0 %v454
    %674 = vmatpush1.msra.mxu0 %v453
    %675 = vmatprep.subr.mxu0 %v458
    %676 = vmatpush1.msra.mxu0 %v457
    %677 = vmatprep.subr.mxu0 %v462
    %678 = vmatpush1.msra.mxu0 %v461
    %679 = vmatprep.subr.mxu0 %v466
    %680 = vmatpush1.msra.mxu0 %v465
    %681 = vmatprep.subr.mxu0 %v470
    %682 = vmatpush1.msra.mxu0 %v469
    %683 = vmatprep.subr.mxu0 %v474
    %684 = vmatpush1.msra.mxu0 %v473
    %685 = vmatprep.subr.mxu0 %v478
    %686 = vmatpush1.msra.mxu0 %v477
    %687 = vmatprep.subr.mxu0 %v482
    %688 = vmatpush1.msra.mxu0 %v481
    %689 = vmatprep.subr.mxu0 %v486
    %690 = vmatpush1.msra.mxu0 %v485
    %691 = vmatprep.subr.mxu0 0.0
    %692 = vmatpush1.msra.mxu0 0.0
    %693 = vmatprep.subr.mxu0 0.0
    %694 = vmatpush1.msra.mxu0 0.0
    %695 = vmatprep.subr.mxu0 0.0
    %696 = vmatpush1.msra.mxu0 0.0
    %697 = vmatprep.subr.mxu0 0.0
    %698 = vmatpush1.msra.mxu0 0.0
    %699 = vmatprep.subr.mxu0 0.0
    %700 = vmatpush1.msra.mxu0 0.0
    %701 = vmatprep.subr.mxu0 0.0
    %702 = vmatpush1.msra.mxu0 0.0
    %703 = vmatprep.subr.mxu0 0.0
    %704 = vmatpush1.msra.mxu0 0.0
    %705 = vmatprep.subr.mxu0 0.0
    %706 = vmatpush1.msra.mxu0 0.0
    %707 = vmatprep.subr.mxu0 0.0
    %708 = vmatpush1.msra.mxu0 0.0
    %709 = vmatprep.subr.mxu0 0.0
    %710 = vmatpush1.msra.mxu0 0.0
    %711 = vmatprep.subr.mxu0 0.0
    %712 = vmatpush1.msra.mxu0 0.0
    %713 = vmatprep.subr.mxu0 0.0
    %714 = vmatpush1.msra.mxu0 0.0
    %715 = vmatprep.subr.mxu0 0.0
    %716 = vmatpush1.msra.mxu0 0.0
    %717 = vmatprep.subr.mxu0 0.0
    %718 = vmatpush1.msra.mxu0 0.0
    %719 = vmatprep.subr.mxu0 0.0
    %720 = vmatpush1.msra.mxu0 0.0
    %721 = vmatprep.subr.mxu0 0.0
    %722 = vmatpush1.msra.mxu0 0.0
    %723 = vmatprep.mubr.f32.mxu0 0.0
    %724 = vmatmul.mubr.f32.gmra.mrb[0].mxu0 %v658
    %v725 = vpop.f32.mrb[0].mxu0
    %v726 = vadd.f32 0.0, %v725
    %v727 = vpop.f32.mrb[0].mxu0
    %v728 = vadd.f32 0.0, %v727
    %729 = vdwg.mxu0
    %730 = vmatprep.subr.mxu0 %v428
    %731 = vmatpush1.msra.mxu0 %v427
    %732 = vmatprep.subr.mxu0 %v432
    %733 = vmatpush1.msra.mxu0 %v431
    %734 = vmatprep.subr.mxu0 %v436
    %735 = vmatpush1.msra.mxu0 %v435
    %736 = vmatprep.subr.mxu0 %v440
    %737 = vmatpush1.msra.mxu0 %v439
    %738 = vmatprep.subr.mxu0 %v444
    %739 = vmatpush1.msra.mxu0 %v443
    %740 = vmatprep.subr.mxu0 %v448
    %741 = vmatpush1.msra.mxu0 %v447
    %742 = vmatprep.subr.mxu0 %v452
    %743 = vmatpush1.msra.mxu0 %v451
    %744 = vmatprep.subr.mxu0 %v456
    %745 = vmatpush1.msra.mxu0 %v455
    %746 = vmatprep.subr.mxu0 %v460
    %747 = vmatpush1.msra.mxu0 %v459
    %748 = vmatprep.subr.mxu0 %v464
    %749 = vmatpush1.msra.mxu0 %v463
    %750 = vmatprep.subr.mxu0 %v468
    %751 = vmatpush1.msra.mxu0 %v467
    %752 = vmatprep.subr.mxu0 %v472
    %753 = vmatpush1.msra.mxu0 %v471
    %754 = vmatprep.subr.mxu0 %v476
    %755 = vmatpush1.msra.mxu0 %v475
    %756 = vmatprep.subr.mxu0 %v480
    %757 = vmatpush1.msra.mxu0 %v479
    %758 = vmatprep.subr.mxu0 %v484
    %759 = vmatpush1.msra.mxu0 %v483
    %760 = vmatprep.subr.mxu0 %v488
    %761 = vmatpush1.msra.mxu0 %v487
    %762 = vmatprep.subr.mxu0 0.0
    %763 = vmatpush1.msra.mxu0 0.0
    %764 = vmatprep.subr.mxu0 0.0
    %765 = vmatpush1.msra.mxu0 0.0
    %766 = vmatprep.subr.mxu0 0.0
    %767 = vmatpush1.msra.mxu0 0.0
    %768 = vmatprep.subr.mxu0 0.0
    %769 = vmatpush1.msra.mxu0 0.0
    %770 = vmatprep.subr.mxu0 0.0
    %771 = vmatpush1.msra.mxu0 0.0
    %772 = vmatprep.subr.mxu0 0.0
    %773 = vmatpush1.msra.mxu0 0.0
    %774 = vmatprep.subr.mxu0 0.0
    %775 = vmatpush1.msra.mxu0 0.0
    %776 = vmatprep.subr.mxu0 0.0
    %777 = vmatpush1.msra.mxu0 0.0
    %778 = vmatprep.subr.mxu0 0.0
    %779 = vmatpush1.msra.mxu0 0.0
    %780 = vmatprep.subr.mxu0 0.0
    %781 = vmatpush1.msra.mxu0 0.0
    %782 = vmatprep.subr.mxu0 0.0
    %783 = vmatpush1.msra.mxu0 0.0
    %784 = vmatprep.subr.mxu0 0.0
    %785 = vmatpush1.msra.mxu0 0.0
    %786 = vmatprep.subr.mxu0 0.0
    %787 = vmatpush1.msra.mxu0 0.0
    %788 = vmatprep.subr.mxu0 0.0
    %789 = vmatpush1.msra.mxu0 0.0
    %790 = vmatprep.subr.mxu0 0.0
    %791 = vmatpush1.msra.mxu0 0.0
    %792 = vmatprep.subr.mxu0 0.0
    %793 = vmatpush1.msra.mxu0 0.0
    %794 = vmatprep.mubr.f32.mxu0 0.0
    %795 = vmatmul.mubr.f32.gmra.mrb[0].mxu0 %v658
    %v796 = vpop.f32.mrb[0].mxu0
    %v797 = vadd.f32 0.0, %v796
    %v798 = vpop.f32.mrb[0].mxu0
    %v799 = vadd.f32 0.0, %v798
    %800 = vdwg.mxu0
    %v805 = vrot.slane %v726, 6
    %v806 = vrot.slane %v728, 6
    %v807 = vrot.slane %v797, 6
    %v808 = vrot.slane %v799, 6
    %v813 = vadd.f32 %v338, %v805
    %v814 = vadd.f32 %v340, %v806
    %v815 = vadd.f32 %v415, %v807
    %v816 = vadd.f32 %v417, %v808
    %v817 = vxor.u32 %v813, 2147483648
    %v818 = vxor.u32 %v814, 2147483648
    %v819 = vxor.u32 %v815, 2147483648
    %v820 = vmul.f32 %v817, 1.442695
    %v821 = vpow.pop %v820
    %v822 = vmul.f32 %v818, 1.442695
    %v823 = vpow.pop %v822
    %v824 = vmul.f32 %v819, 1.442695
    %v825 = vpow.pop %v824
    %v826 = vadd.f32 %v821, 1.0
    %v827 = vadd.f32 %v823, 1.0
    %v828 = vadd.f32 %v825, 1.0
    %v829 = vrcp.pop %v826
    %v830 = vmul.f32 1.0, %v829
    %v831 = vrcp.pop %v827
    %v832 = vmul.f32 1.0, %v831
    %v833 = vrcp.pop %v828
    %v834 = vmul.f32 1.0, %v833
    %v835 = vtanh.pop %v816
    %v837 = vrot.slane %v656, 6
    %v839 = vmul.f32 %v832, %v837
    %v840 = vmul.f32 %v830, %v835
    %v841 = vadd.f32 %v839, %v840
    %v842 = vtanh.pop %v841
    %v843 = vmul.f32 %v834, %v842
    %v845 = vrot.slane %v843, 2
    %847 = vmatprep.subr.mxu0 %v426
    %848 = vmatpush1.msra.mxu0 %v425
    %849 = vmatprep.subr.mxu0 %v430
    %850 = vmatpush1.msra.mxu0 %v429
    %851 = vmatprep.subr.mxu0 %v434
    %852 = vmatpush1.msra.mxu0 %v433
    %853 = vmatprep.subr.mxu0 %v438
    %854 = vmatpush1.msra.mxu0 %v437
    %855 = vmatprep.subr.mxu0 %v442
    %856 = vmatpush1.msra.mxu0 %v441
    %857 = vmatprep.subr.mxu0 %v446
    %858 = vmatpush1.msra.mxu0 %v445
    %859 = vmatprep.subr.mxu0 %v450
    %860 = vmatpush1.msra.mxu0 %v449
    %861 = vmatprep.subr.mxu0 %v454
    %862 = vmatpush1.msra.mxu0 %v453
    %863 = vmatprep.subr.mxu0 %v458
    %864 = vmatpush1.msra.mxu0 %v457
    %865 = vmatprep.subr.mxu0 %v462
    %866 = vmatpush1.msra.mxu0 %v461
    %867 = vmatprep.subr.mxu0 %v466
    %868 = vmatpush1.msra.mxu0 %v465
    %869 = vmatprep.subr.mxu0 %v470
    %870 = vmatpush1.msra.mxu0 %v469
    %871 = vmatprep.subr.mxu0 %v474
    %872 = vmatpush1.msra.mxu0 %v473
    %873 = vmatprep.subr.mxu0 %v478
    %874 = vmatpush1.msra.mxu0 %v477
    %875 = vmatprep.subr.mxu0 %v482
    %876 = vmatpush1.msra.mxu0 %v481
    %877 = vmatprep.subr.mxu0 %v486
    %878 = vmatpush1.msra.mxu0 %v485
    %879 = vmatprep.subr.mxu0 0.0
    %880 = vmatpush1.msra.mxu0 0.0
    %881 = vmatprep.subr.mxu0 0.0
    %882 = vmatpush1.msra.mxu0 0.0
    %883 = vmatprep.subr.mxu0 0.0
    %884 = vmatpush1.msra.mxu0 0.0
    %885 = vmatprep.subr.mxu0 0.0
    %886 = vmatpush1.msra.mxu0 0.0
    %887 = vmatprep.subr.mxu0 0.0
    %888 = vmatpush1.msra.mxu0 0.0
    %889 = vmatprep.subr.mxu0 0.0
    %890 = vmatpush1.msra.mxu0 0.0
    %891 = vmatprep.subr.mxu0 0.0
    %892 = vmatpush1.msra.mxu0 0.0
    %893 = vmatprep.subr.mxu0 0.0
    %894 = vmatpush1.msra.mxu0 0.0
    %895 = vmatprep.subr.mxu0 0.0
    %896 = vmatpush1.msra.mxu0 0.0
    %897 = vmatprep.subr.mxu0 0.0
    %898 = vmatpush1.msra.mxu0 0.0
    %899 = vmatprep.subr.mxu0 0.0
    %900 = vmatpush1.msra.mxu0 0.0
    %901 = vmatprep.subr.mxu0 0.0
    %902 = vmatpush1.msra.mxu0 0.0
    %903 = vmatprep.subr.mxu0 0.0
    %904 = vmatpush1.msra.mxu0 0.0
    %905 = vmatprep.subr.mxu0 0.0
    %906 = vmatpush1.msra.mxu0 0.0
    %907 = vmatprep.subr.mxu0 0.0
    %908 = vmatpush1.msra.mxu0 0.0
    %909 = vmatprep.subr.mxu0 0.0
    %910 = vmatpush1.msra.mxu0 0.0
    %911 = vmatprep.mubr.f32.mxu0 0.0
    %912 = vmatmul.mubr.f32.gmra.mrb[0].mxu0 %v845
    %v913 = vpop.f32.mrb[0].mxu0
    %v914 = vadd.f32 0.0, %v913
    %v915 = vpop.f32.mrb[0].mxu0
    %v916 = vadd.f32 0.0, %v915
    %917 = vdwg.mxu0
    %918 = vmatprep.subr.mxu0 %v428
    %919 = vmatpush1.msra.mxu0 %v427
    %920 = vmatprep.subr.mxu0 %v432
    %921 = vmatpush1.msra.mxu0 %v431
    %922 = vmatprep.subr.mxu0 %v436
    %923 = vmatpush1.msra.mxu0 %v435
    %924 = vmatprep.subr.mxu0 %v440
    %925 = vmatpush1.msra.mxu0 %v439
    %926 = vmatprep.subr.mxu0 %v444
    %927 = vmatpush1.msra.mxu0 %v443
    %928 = vmatprep.subr.mxu0 %v448
    %929 = vmatpush1.msra.mxu0 %v447
    %930 = vmatprep.subr.mxu0 %v452
    %931 = vmatpush1.msra.mxu0 %v451
    %932 = vmatprep.subr.mxu0 %v456
    %933 = vmatpush1.msra.mxu0 %v455
    %934 = vmatprep.subr.mxu0 %v460
    %935 = vmatpush1.msra.mxu0 %v459
    %936 = vmatprep.subr.mxu0 %v464
    %937 = vmatpush1.msra.mxu0 %v463
    %938 = vmatprep.subr.mxu0 %v468
    %939 = vmatpush1.msra.mxu0 %v467
    %940 = vmatprep.subr.mxu0 %v472
    %941 = vmatpush1.msra.mxu0 %v471
    %942 = vmatprep.subr.mxu0 %v476
    %943 = vmatpush1.msra.mxu0 %v475
    %944 = vmatprep.subr.mxu0 %v480
    %945 = vmatpush1.msra.mxu0 %v479
    %946 = vmatprep.subr.mxu0 %v484
    %947 = vmatpush1.msra.mxu0 %v483
    %948 = vmatprep.subr.mxu0 %v488
    %949 = vmatpush1.msra.mxu0 %v487
    %950 = vmatprep.subr.mxu0 0.0
    %951 = vmatpush1.msra.mxu0 0.0
    %952 = vmatprep.subr.mxu0 0.0
    %953 = vmatpush1.msra.mxu0 0.0
    %954 = vmatprep.subr.mxu0 0.0
    %955 = vmatpush1.msra.mxu0 0.0
    %956 = vmatprep.subr.mxu0 0.0
    %957 = vmatpush1.msra.mxu0 0.0
    %958 = vmatprep.subr.mxu0 0.0
    %959 = vmatpush1.msra.mxu0 0.0
    %960 = vmatprep.subr.mxu0 0.0
    %961 = vmatpush1.msra.mxu0 0.0
    %962 = vmatprep.subr.mxu0 0.0
    %963 = vmatpush1.msra.mxu0 0.0
    %964 = vmatprep.subr.mxu0 0.0
    %965 = vmatpush1.msra.mxu0 0.0
    %966 = vmatprep.subr.mxu0 0.0
    %967 = vmatpush1.msra.mxu0 0.0
    %968 = vmatprep.subr.mxu0 0.0
    %969 = vmatpush1.msra.mxu0 0.0
    %970 = vmatprep.subr.mxu0 0.0
    %971 = vmatpush1.msra.mxu0 0.0
    %972 = vmatprep.subr.mxu0 0.0
    %973 = vmatpush1.msra.mxu0 0.0
    %974 = vmatprep.subr.mxu0 0.0
    %975 = vmatpush1.msra.mxu0 0.0
    %976 = vmatprep.subr.mxu0 0.0
    %977 = vmatpush1.msra.mxu0 0.0
    %978 = vmatprep.subr.mxu0 0.0
    %979 = vmatpush1.msra.mxu0 0.0
    %980 = vmatprep.subr.mxu0 0.0
    %981 = vmatpush1.msra.mxu0 0.0
    %982 = vmatprep.mubr.f32.mxu0 0.0
    %983 = vmatmul.mubr.f32.gmra.mrb[0].mxu0 %v845
    %v984 = vpop.f32.mrb[0].mxu0
    %v985 = vadd.f32 0.0, %v984
    %v986 = vpop.f32.mrb[0].mxu0
    %v987 = vadd.f32 0.0, %v986
    %988 = vdwg.mxu0
    %v993 = vrot.slane %v914, 4
    %v994 = vrot.slane %v916, 4
    %v995 = vrot.slane %v985, 4
    %v996 = vrot.slane %v987, 4
    %v1001 = vadd.f32 %v338, %v993
    %v1002 = vadd.f32 %v340, %v994
    %v1003 = vadd.f32 %v415, %v995
    %v1004 = vadd.f32 %v417, %v996
    %v1005 = vxor.u32 %v1001, 2147483648
    %v1006 = vxor.u32 %v1002, 2147483648
    %v1007 = vxor.u32 %v1003, 2147483648
    %v1008 = vmul.f32 %v1005, 1.442695
    %v1009 = vpow.pop %v1008
    %v1010 = vmul.f32 %v1006, 1.442695
    %v1011 = vpow.pop %v1010
    %v1012 = vmul.f32 %v1007, 1.442695
    %v1013 = vpow.pop %v1012
    %v1014 = vadd.f32 %v1009, 1.0
    %v1015 = vadd.f32 %v1011, 1.0
    %v1016 = vadd.f32 %v1013, 1.0
    %v1017 = vrcp.pop %v1014
    %v1018 = vmul.f32 1.0, %v1017
    %v1019 = vrcp.pop %v1015
    %v1020 = vmul.f32 1.0, %v1019
    %v1021 = vrcp.pop %v1016
    %v1022 = vmul.f32 1.0, %v1021
    %v1023 = vtanh.pop %v1004
    %v1025 = vrot.slane %v841, 6
    %v1027 = vmul.f32 %v1020, %v1025
    %v1028 = vmul.f32 %v1018, %v1023
    %v1029 = vadd.f32 %v1027, %v1028
    %v1030 = vtanh.pop %v1029
    %v1031 = vmul.f32 %v1022, %v1030
    %v1033 = vrot.slane %v1031, 4
    %1035 = vmatprep.subr.mxu0 %v426
    %1036 = vmatpush1.msra.mxu0 %v425
    %1037 = vmatprep.subr.mxu0 %v430
    %1038 = vmatpush1.msra.mxu0 %v429
    %1039 = vmatprep.subr.mxu0 %v434
    %1040 = vmatpush1.msra.mxu0 %v433
    %1041 = vmatprep.subr.mxu0 %v438
    %1042 = vmatpush1.msra.mxu0 %v437
    %1043 = vmatprep.subr.mxu0 %v442
    %1044 = vmatpush1.msra.mxu0 %v441
    %1045 = vmatprep.subr.mxu0 %v446
    %1046 = vmatpush1.msra.mxu0 %v445
    %1047 = vmatprep.subr.mxu0 %v450
    %1048 = vmatpush1.msra.mxu0 %v449
    %1049 = vmatprep.subr.mxu0 %v454
    %1050 = vmatpush1.msra.mxu0 %v453
    %1051 = vmatprep.subr.mxu0 %v458
    %1052 = vmatpush1.msra.mxu0 %v457
    %1053 = vmatprep.subr.mxu0 %v462
    %1054 = vmatpush1.msra.mxu0 %v461
    %1055 = vmatprep.subr.mxu0 %v466
    %1056 = vmatpush1.msra.mxu0 %v465
    %1057 = vmatprep.subr.mxu0 %v470
    %1058 = vmatpush1.msra.mxu0 %v469
    %1059 = vmatprep.subr.mxu0 %v474
    %1060 = vmatpush1.msra.mxu0 %v473
    %1061 = vmatprep.subr.mxu0 %v478
    %1062 = vmatpush1.msra.mxu0 %v477
    %1063 = vmatprep.subr.mxu0 %v482
    %1064 = vmatpush1.msra.mxu0 %v481
    %1065 = vmatprep.subr.mxu0 %v486
    %1066 = vmatpush1.msra.mxu0 %v485
    %1067 = vmatprep.subr.mxu0 0.0
    %1068 = vmatpush1.msra.mxu0 0.0
    %1069 = vmatprep.subr.mxu0 0.0
    %1070 = vmatpush1.msra.mxu0 0.0
    %1071 = vmatprep.subr.mxu0 0.0
    %1072 = vmatpush1.msra.mxu0 0.0
    %1073 = vmatprep.subr.mxu0 0.0
    %1074 = vmatpush1.msra.mxu0 0.0
    %1075 = vmatprep.subr.mxu0 0.0
    %1076 = vmatpush1.msra.mxu0 0.0
    %1077 = vmatprep.subr.mxu0 0.0
    %1078 = vmatpush1.msra.mxu0 0.0
    %1079 = vmatprep.subr.mxu0 0.0
    %1080 = vmatpush1.msra.mxu0 0.0
    %1081 = vmatprep.subr.mxu0 0.0
    %1082 = vmatpush1.msra.mxu0 0.0
    %1083 = vmatprep.subr.mxu0 0.0
    %1084 = vmatpush1.msra.mxu0 0.0
    %1085 = vmatprep.subr.mxu0 0.0
    %1086 = vmatpush1.msra.mxu0 0.0
    %1087 = vmatprep.subr.mxu0 0.0
    %1088 = vmatpush1.msra.mxu0 0.0
    %1089 = vmatprep.subr.mxu0 0.0
    %1090 = vmatpush1.msra.mxu0 0.0
    %1091 = vmatprep.subr.mxu0 0.0
    %1092 = vmatpush1.msra.mxu0 0.0
    %1093 = vmatprep.subr.mxu0 0.0
    %1094 = vmatpush1.msra.mxu0 0.0
    %1095 = vmatprep.subr.mxu0 0.0
    %1096 = vmatpush1.msra.mxu0 0.0
    %1097 = vmatprep.subr.mxu0 0.0
    %1098 = vmatpush1.msra.mxu0 0.0
    %1099 = vmatprep.mubr.f32.mxu0 0.0
    %1100 = vmatmul.mubr.f32.gmra.mrb[0].mxu0 %v1033
    %v1101 = vpop.f32.mrb[0].mxu0
    %v1102 = vadd.f32 0.0, %v1101
    %v1103 = vpop.f32.mrb[0].mxu0
    %v1104 = vadd.f32 0.0, %v1103
    %1105 = vdwg.mxu0
    %1106 = vmatprep.subr.mxu0 %v428
    %1107 = vmatpush1.msra.mxu0 %v427
    %1108 = vmatprep.subr.mxu0 %v432
    %1109 = vmatpush1.msra.mxu0 %v431
    %1110 = vmatprep.subr.mxu0 %v436
    %1111 = vmatpush1.msra.mxu0 %v435
    %1112 = vmatprep.subr.mxu0 %v440
    %1113 = vmatpush1.msra.mxu0 %v439
    %1114 = vmatprep.subr.mxu0 %v444
    %1115 = vmatpush1.msra.mxu0 %v443
    %1116 = vmatprep.subr.mxu0 %v448
    %1117 = vmatpush1.msra.mxu0 %v447
    %1118 = vmatprep.subr.mxu0 %v452
    %1119 = vmatpush1.msra.mxu0 %v451
    %1120 = vmatprep.subr.mxu0 %v456
    %1121 = vmatpush1.msra.mxu0 %v455
    %1122 = vmatprep.subr.mxu0 %v460
    %1123 = vmatpush1.msra.mxu0 %v459
    %1124 = vmatprep.subr.mxu0 %v464
    %1125 = vmatpush1.msra.mxu0 %v463
    %1126 = vmatprep.subr.mxu0 %v468
    %1127 = vmatpush1.msra.mxu0 %v467
    %1128 = vmatprep.subr.mxu0 %v472
    %1129 = vmatpush1.msra.mxu0 %v471
    %1130 = vmatprep.subr.mxu0 %v476
    %1131 = vmatpush1.msra.mxu0 %v475
    %1132 = vmatprep.subr.mxu0 %v480
    %1133 = vmatpush1.msra.mxu0 %v479
    %1134 = vmatprep.subr.mxu0 %v484
    %1135 = vmatpush1.msra.mxu0 %v483
    %1136 = vmatprep.subr.mxu0 %v488
    %1137 = vmatpush1.msra.mxu0 %v487
    %1138 = vmatprep.subr.mxu0 0.0
    %1139 = vmatpush1.msra.mxu0 0.0
    %1140 = vmatprep.subr.mxu0 0.0
    %1141 = vmatpush1.msra.mxu0 0.0
    %1142 = vmatprep.subr.mxu0 0.0
    %1143 = vmatpush1.msra.mxu0 0.0
    %1144 = vmatprep.subr.mxu0 0.0
    %1145 = vmatpush1.msra.mxu0 0.0
    %1146 = vmatprep.subr.mxu0 0.0
    %1147 = vmatpush1.msra.mxu0 0.0
    %1148 = vmatprep.subr.mxu0 0.0
    %1149 = vmatpush1.msra.mxu0 0.0
    %1150 = vmatprep.subr.mxu0 0.0
    %1151 = vmatpush1.msra.mxu0 0.0
    %1152 = vmatprep.subr.mxu0 0.0
    %1153 = vmatpush1.msra.mxu0 0.0
    %1154 = vmatprep.subr.mxu0 0.0
    %1155 = vmatpush1.msra.mxu0 0.0
    %1156 = vmatprep.subr.mxu0 0.0
    %1157 = vmatpush1.msra.mxu0 0.0
    %1158 = vmatprep.subr.mxu0 0.0
    %1159 = vmatpush1.msra.mxu0 0.0
    %1160 = vmatprep.subr.mxu0 0.0
    %1161 = vmatpush1.msra.mxu0 0.0
    %1162 = vmatprep.subr.mxu0 0.0
    %1163 = vmatpush1.msra.mxu0 0.0
    %1164 = vmatprep.subr.mxu0 0.0
    %1165 = vmatpush1.msra.mxu0 0.0
    %1166 = vmatprep.subr.mxu0 0.0
    %1167 = vmatpush1.msra.mxu0 0.0
    %1168 = vmatprep.subr.mxu0 0.0
    %1169 = vmatpush1.msra.mxu0 0.0
    %1170 = vmatprep.mubr.f32.mxu0 0.0
    %1171 = vmatmul.mubr.f32.gmra.mrb[0].mxu0 %v1033
    %v1172 = vpop.f32.mrb[0].mxu0
    %v1173 = vadd.f32 0.0, %v1172
    %v1174 = vpop.f32.mrb[0].mxu0
    %v1175 = vadd.f32 0.0, %v1174
    %1176 = vdwg.mxu0
    %v1181 = vrot.slane %v1102, 2
    %v1182 = vrot.slane %v1104, 2
    %v1183 = vrot.slane %v1173, 2
    %v1184 = vrot.slane %v1175, 2
    %v1189 = vadd.f32 %v338, %v1181
    %v1190 = vadd.f32 %v340, %v1182
    %v1191 = vadd.f32 %v415, %v1183
    %v1192 = vadd.f32 %v417, %v1184
    %v1193 = vxor.u32 %v1189, 2147483648
    %v1194 = vxor.u32 %v1190, 2147483648
    %v1195 = vxor.u32 %v1191, 2147483648
    %v1196 = vmul.f32 %v1193, 1.442695
    %v1197 = vpow.pop %v1196
    %v1198 = vmul.f32 %v1194, 1.442695
    %v1199 = vpow.pop %v1198
    %v1200 = vmul.f32 %v1195, 1.442695
    %v1201 = vpow.pop %v1200
    %v1202 = vadd.f32 %v1197, 1.0
    %v1203 = vadd.f32 %v1199, 1.0
    %v1204 = vadd.f32 %v1201, 1.0
    %v1205 = vrcp.pop %v1202
    %v1206 = vmul.f32 1.0, %v1205
    %v1207 = vrcp.pop %v1203
    %v1208 = vmul.f32 1.0, %v1207
    %v1209 = vrcp.pop %v1204
    %v1210 = vmul.f32 1.0, %v1209
    %v1211 = vtanh.pop %v1192
    %v1213 = vrot.slane %v1029, 6
    %v1215 = vmul.f32 %v1208, %v1213
    %v1216 = vmul.f32 %v1206, %v1211
    %v1217 = vadd.f32 %v1215, %v1216
    %v1218 = vtanh.pop %v1217
    %v1219 = vmul.f32 %v1210, %v1218
    %v1221 = vrot.slane %v1219, 6
    %1223 = vmatprep.subr.mxu0 %v426
    %1224 = vmatpush1.msra.mxu0 %v425
    %1225 = vmatprep.subr.mxu0 %v430
    %1226 = vmatpush1.msra.mxu0 %v429
    %1227 = vmatprep.subr.mxu0 %v434
    %1228 = vmatpush1.msra.mxu0 %v433
    %1229 = vmatprep.subr.mxu0 %v438
    %1230 = vmatpush1.msra.mxu0 %v437
    %1231 = vmatprep.subr.mxu0 %v442
    %1232 = vmatpush1.msra.mxu0 %v441
    %1233 = vmatprep.subr.mxu0 %v446
    %1234 = vmatpush1.msra.mxu0 %v445
    %1235 = vmatprep.subr.mxu0 %v450
    %1236 = vmatpush1.msra.mxu0 %v449
    %1237 = vmatprep.subr.mxu0 %v454
    %1238 = vmatpush1.msra.mxu0 %v453
    %1239 = vmatprep.subr.mxu0 %v458
    %1240 = vmatpush1.msra.mxu0 %v457
    %1241 = vmatprep.subr.mxu0 %v462
    %1242 = vmatpush1.msra.mxu0 %v461
    %1243 = vmatprep.subr.mxu0 %v466
    %1244 = vmatpush1.msra.mxu0 %v465
    %1245 = vmatprep.subr.mxu0 %v470
    %1246 = vmatpush1.msra.mxu0 %v469
    %1247 = vmatprep.subr.mxu0 %v474
    %1248 = vmatpush1.msra.mxu0 %v473
    %1249 = vmatprep.subr.mxu0 %v478
    %1250 = vmatpush1.msra.mxu0 %v477
    %1251 = vmatprep.subr.mxu0 %v482
    %1252 = vmatpush1.msra.mxu0 %v481
    %1253 = vmatprep.subr.mxu0 %v486
    %1254 = vmatpush1.msra.mxu0 %v485
    %1255 = vmatprep.subr.mxu0 0.0
    %1256 = vmatpush1.msra.mxu0 0.0
    %1257 = vmatprep.subr.mxu0 0.0
    %1258 = vmatpush1.msra.mxu0 0.0
    %1259 = vmatprep.subr.mxu0 0.0
    %1260 = vmatpush1.msra.mxu0 0.0
    %1261 = vmatprep.subr.mxu0 0.0
    %1262 = vmatpush1.msra.mxu0 0.0
    %1263 = vmatprep.subr.mxu0 0.0
    %1264 = vmatpush1.msra.mxu0 0.0
    %1265 = vmatprep.subr.mxu0 0.0
    %1266 = vmatpush1.msra.mxu0 0.0
    %1267 = vmatprep.subr.mxu0 0.0
    %1268 = vmatpush1.msra.mxu0 0.0
    %1269 = vmatprep.subr.mxu0 0.0
    %1270 = vmatpush1.msra.mxu0 0.0
    %1271 = vmatprep.subr.mxu0 0.0
    %1272 = vmatpush1.msra.mxu0 0.0
    %1273 = vmatprep.subr.mxu0 0.0
    %1274 = vmatpush1.msra.mxu0 0.0
    %1275 = vmatprep.subr.mxu0 0.0
    %1276 = vmatpush1.msra.mxu0 0.0
    %1277 = vmatprep.subr.mxu0 0.0
    %1278 = vmatpush1.msra.mxu0 0.0
    %1279 = vmatprep.subr.mxu0 0.0
    %1280 = vmatpush1.msra.mxu0 0.0
    %1281 = vmatprep.subr.mxu0 0.0
    %1282 = vmatpush1.msra.mxu0 0.0
    %1283 = vmatprep.subr.mxu0 0.0
    %1284 = vmatpush1.msra.mxu0 0.0
    %1285 = vmatprep.subr.mxu0 0.0
    %1286 = vmatpush1.msra.mxu0 0.0
    %1287 = vmatprep.mubr.f32.mxu0 0.0
    %1288 = vmatmul.mubr.f32.gmra.mrb[0].mxu0 %v1221
    %v1289 = vpop.f32.mrb[0].mxu0
    %v1290 = vadd.f32 0.0, %v1289
    %v1291 = vpop.f32.mrb[0].mxu0
    %v1292 = vadd.f32 0.0, %v1291
    %1293 = vdwg.mxu0
    %1294 = vmatprep.subr.mxu0 %v428
    %1295 = vmatpush1.msra.mxu0 %v427
    %1296 = vmatprep.subr.mxu0 %v432
    %1297 = vmatpush1.msra.mxu0 %v431
    %1298 = vmatprep.subr.mxu0 %v436
    %1299 = vmatpush1.msra.mxu0 %v435
    %1300 = vmatprep.subr.mxu0 %v440
    %1301 = vmatpush1.msra.mxu0 %v439
    %1302 = vmatprep.subr.mxu0 %v444
    %1303 = vmatpush1.msra.mxu0 %v443
    %1304 = vmatprep.subr.mxu0 %v448
    %1305 = vmatpush1.msra.mxu0 %v447
    %1306 = vmatprep.subr.mxu0 %v452
    %1307 = vmatpush1.msra.mxu0 %v451
    %1308 = vmatprep.subr.mxu0 %v456
    %1309 = vmatpush1.msra.mxu0 %v455
    %1310 = vmatprep.subr.mxu0 %v460
    %1311 = vmatpush1.msra.mxu0 %v459
    %1312 = vmatprep.subr.mxu0 %v464
    %1313 = vmatpush1.msra.mxu0 %v463
    %1314 = vmatprep.subr.mxu0 %v468
    %1315 = vmatpush1.msra.mxu0 %v467
    %1316 = vmatprep.subr.mxu0 %v472
    %1317 = vmatpush1.msra.mxu0 %v471
    %1318 = vmatprep.subr.mxu0 %v476
    %1319 = vmatpush1.msra.mxu0 %v475
    %1320 = vmatprep.subr.mxu0 %v480
    %1321 = vmatpush1.msra.mxu0 %v479
    %1322 = vmatprep.subr.mxu0 %v484
    %1323 = vmatpush1.msra.mxu0 %v483
    %1324 = vmatprep.subr.mxu0 %v488
    %1325 = vmatpush1.msra.mxu0 %v487
    %1326 = vmatprep.subr.mxu0 0.0
    %1327 = vmatpush1.msra.mxu0 0.0
    %1328 = vmatprep.subr.mxu0 0.0
    %1329 = vmatpush1.msra.mxu0 0.0
    %1330 = vmatprep.subr.mxu0 0.0
    %1331 = vmatpush1.msra.mxu0 0.0
    %1332 = vmatprep.subr.mxu0 0.0
    %1333 = vmatpush1.msra.mxu0 0.0
    %1334 = vmatprep.subr.mxu0 0.0
    %1335 = vmatpush1.msra.mxu0 0.0
    %1336 = vmatprep.subr.mxu0 0.0
    %1337 = vmatpush1.msra.mxu0 0.0
    %1338 = vmatprep.subr.mxu0 0.0
    %1339 = vmatpush1.msra.mxu0 0.0
    %1340 = vmatprep.subr.mxu0 0.0
    %1341 = vmatpush1.msra.mxu0 0.0
    %1342 = vmatprep.subr.mxu0 0.0
    %1343 = vmatpush1.msra.mxu0 0.0
    %1344 = vmatprep.subr.mxu0 0.0
    %1345 = vmatpush1.msra.mxu0 0.0
    %1346 = vmatprep.subr.mxu0 0.0
    %1347 = vmatpush1.msra.mxu0 0.0
    %1348 = vmatprep.subr.mxu0 0.0
    %1349 = vmatpush1.msra.mxu0 0.0
    %1350 = vmatprep.subr.mxu0 0.0
    %1351 = vmatpush1.msra.mxu0 0.0
    %1352 = vmatprep.subr.mxu0 0.0
    %1353 = vmatpush1.msra.mxu0 0.0
    %1354 = vmatprep.subr.mxu0 0.0
    %1355 = vmatpush1.msra.mxu0 0.0
    %1356 = vmatprep.subr.mxu0 0.0
    %1357 = vmatpush1.msra.mxu0 0.0
    %1358 = vmatprep.mubr.f32.mxu0 0.0
    %1359 = vmatmul.mubr.f32.gmra.mrb[0].mxu0 %v1221
    %v1360 = vpop.f32.mrb[0].mxu0
    %v1361 = vadd.f32 0.0, %v1360
    %v1362 = vpop.f32.mrb[0].mxu0
    %v1363 = vadd.f32 0.0, %v1362
    %1364 = vdwg.mxu0
    %v1365 = vadd.f32 %v344, %v1290
    %v1366 = vadd.f32 %v346, %v1292
    %v1367 = vadd.f32 %v421, %v1361
    %v1368 = vadd.f32 %v423, %v1363
    %v1369 = vxor.u32 %v1365, 2147483648
    %v1370 = vxor.u32 %v1366, 2147483648
    %v1371 = vxor.u32 %v1367, 2147483648
    %v1372 = vmul.f32 %v1369, 1.442695
    %v1373 = vpow.pop %v1372
    %v1374 = vmul.f32 %v1370, 1.442695
    %v1375 = vpow.pop %v1374
    %v1376 = vmul.f32 %v1371, 1.442695
    %v1377 = vpow.pop %v1376
    %v1378 = vadd.f32 %v1373, 1.0
    %v1379 = vadd.f32 %v1375, 1.0
    %v1380 = vadd.f32 %v1377, 1.0
    %v1381 = vrcp.pop %v1378
    %v1382 = vmul.f32 1.0, %v1381
    %v1383 = vrcp.pop %v1379
    %v1384 = vmul.f32 1.0, %v1383
    %v1385 = vrcp.pop %v1380
    %v1386 = vmul.f32 1.0, %v1385
    %v1387 = vtanh.pop %v1368
    %v1389 = vrot.slane %v1217, 6
    %v1391 = vmul.f32 %v1384, %v1389
    %v1392 = vmul.f32 %v1382, %v1387
    %v1393 = vadd.f32 %v1391, %v1392
    %v1394 = vtanh.pop %v1393
    %v1395 = vmul.f32 %v1386, %v1394
    %1396 = vmatprep.subr.mxu0 %v426
    %1397 = vmatpush1.msra.mxu0 %v425
    %1398 = vmatprep.subr.mxu0 %v430
    %1399 = vmatpush1.msra.mxu0 %v429
    %1400 = vmatprep.subr.mxu0 %v434
    %1401 = vmatpush1.msra.mxu0 %v433
    %1402 = vmatprep.subr.mxu0 %v438
    %1403 = vmatpush1.msra.mxu0 %v437
    %1404 = vmatprep.subr.mxu0 %v442
    %1405 = vmatpush1.msra.mxu0 %v441
    %1406 = vmatprep.subr.mxu0 %v446
    %1407 = vmatpush1.msra.mxu0 %v445
    %1408 = vmatprep.subr.mxu0 %v450
    %1409 = vmatpush1.msra.mxu0 %v449
    %1410 = vmatprep.subr.mxu0 %v454
    %1411 = vmatpush1.msra.mxu0 %v453
    %1412 = vmatprep.subr.mxu0 %v458
    %1413 = vmatpush1.msra.mxu0 %v457
    %1414 = vmatprep.subr.mxu0 %v462
    %1415 = vmatpush1.msra.mxu0 %v461
    %1416 = vmatprep.subr.mxu0 %v466
    %1417 = vmatpush1.msra.mxu0 %v465
    %1418 = vmatprep.subr.mxu0 %v470
    %1419 = vmatpush1.msra.mxu0 %v469
    %1420 = vmatprep.subr.mxu0 %v474
    %1421 = vmatpush1.msra.mxu0 %v473
    %1422 = vmatprep.subr.mxu0 %v478
    %1423 = vmatpush1.msra.mxu0 %v477
    %1424 = vmatprep.subr.mxu0 %v482
    %1425 = vmatpush1.msra.mxu0 %v481
    %1426 = vmatprep.subr.mxu0 %v486
    %1427 = vmatpush1.msra.mxu0 %v485
    %1428 = vmatprep.subr.mxu0 0.0
    %1429 = vmatpush1.msra.mxu0 0.0
    %1430 = vmatprep.subr.mxu0 0.0
    %1431 = vmatpush1.msra.mxu0 0.0
    %1432 = vmatprep.subr.mxu0 0.0
    %1433 = vmatpush1.msra.mxu0 0.0
    %1434 = vmatprep.subr.mxu0 0.0
    %1435 = vmatpush1.msra.mxu0 0.0
    %1436 = vmatprep.subr.mxu0 0.0
    %1437 = vmatpush1.msra.mxu0 0.0
    %1438 = vmatprep.subr.mxu0 0.0
    %1439 = vmatpush1.msra.mxu0 0.0
    %1440 = vmatprep.subr.mxu0 0.0
    %1441 = vmatpush1.msra.mxu0 0.0
    %1442 = vmatprep.subr.mxu0 0.0
    %1443 = vmatpush1.msra.mxu0 0.0
    %1444 = vmatprep.subr.mxu0 0.0
    %1445 = vmatpush1.msra.mxu0 0.0
    %1446 = vmatprep.subr.mxu0 0.0
    %1447 = vmatpush1.msra.mxu0 0.0
    %1448 = vmatprep.subr.mxu0 0.0
    %1449 = vmatpush1.msra.mxu0 0.0
    %1450 = vmatprep.subr.mxu0 0.0
    %1451 = vmatpush1.msra.mxu0 0.0
    %1452 = vmatprep.subr.mxu0 0.0
    %1453 = vmatpush1.msra.mxu0 0.0
    %1454 = vmatprep.subr.mxu0 0.0
    %1455 = vmatpush1.msra.mxu0 0.0
    %1456 = vmatprep.subr.mxu0 0.0
    %1457 = vmatpush1.msra.mxu0 0.0
    %1458 = vmatprep.subr.mxu0 0.0
    %1459 = vmatpush1.msra.mxu0 0.0
    %1460 = vmatprep.mubr.f32.mxu0 0.0
    %1461 = vmatmul.mubr.f32.gmra.mrb[0].mxu0 %v1395
    %v1462 = vpop.f32.mrb[0].mxu0
    %v1463 = vadd.f32 0.0, %v1462
    %v1464 = vpop.f32.mrb[0].mxu0
    %v1465 = vadd.f32 0.0, %v1464
    %1466 = vdwg.mxu0
    %1467 = vmatprep.subr.mxu0 %v428
    %1468 = vmatpush1.msra.mxu0 %v427
    %1469 = vmatprep.subr.mxu0 %v432
    %1470 = vmatpush1.msra.mxu0 %v431
    %1471 = vmatprep.subr.mxu0 %v436
    %1472 = vmatpush1.msra.mxu0 %v435
    %1473 = vmatprep.subr.mxu0 %v440
    %1474 = vmatpush1.msra.mxu0 %v439
    %1475 = vmatprep.subr.mxu0 %v444
    %1476 = vmatpush1.msra.mxu0 %v443
    %1477 = vmatprep.subr.mxu0 %v448
    %1478 = vmatpush1.msra.mxu0 %v447
    %1479 = vmatprep.subr.mxu0 %v452
    %1480 = vmatpush1.msra.mxu0 %v451
    %1481 = vmatprep.subr.mxu0 %v456
    %1482 = vmatpush1.msra.mxu0 %v455
    %1483 = vmatprep.subr.mxu0 %v460
    %1484 = vmatpush1.msra.mxu0 %v459
    %1485 = vmatprep.subr.mxu0 %v464
    %1486 = vmatpush1.msra.mxu0 %v463
    %1487 = vmatprep.subr.mxu0 %v468
    %1488 = vmatpush1.msra.mxu0 %v467
    %1489 = vmatprep.subr.mxu0 %v472
    %1490 = vmatpush1.msra.mxu0 %v471
    %1491 = vmatprep.subr.mxu0 %v476
    %1492 = vmatpush1.msra.mxu0 %v475
    %1493 = vmatprep.subr.mxu0 %v480
    %1494 = vmatpush1.msra.mxu0 %v479
    %1495 = vmatprep.subr.mxu0 %v484
    %1496 = vmatpush1.msra.mxu0 %v483
    %1497 = vmatprep.subr.mxu0 %v488
    %1498 = vmatpush1.msra.mxu0 %v487
    %1499 = vmatprep.subr.mxu0 0.0
    %1500 = vmatpush1.msra.mxu0 0.0
    %1501 = vmatprep.subr.mxu0 0.0
    %1502 = vmatpush1.msra.mxu0 0.0
    %1503 = vmatprep.subr.mxu0 0.0
    %1504 = vmatpush1.msra.mxu0 0.0
    %1505 = vmatprep.subr.mxu0 0.0
    %1506 = vmatpush1.msra.mxu0 0.0
    %1507 = vmatprep.subr.mxu0 0.0
    %1508 = vmatpush1.msra.mxu0 0.0
    %1509 = vmatprep.subr.mxu0 0.0
    %1510 = vmatpush1.msra.mxu0 0.0
    %1511 = vmatprep.subr.mxu0 0.0
    %1512 = vmatpush1.msra.mxu0 0.0
    %1513 = vmatprep.subr.mxu0 0.0
    %1514 = vmatpush1.msra.mxu0 0.0
    %1515 = vmatprep.subr.mxu0 0.0
    %1516 = vmatpush1.msra.mxu0 0.0
    %1517 = vmatprep.subr.mxu0 0.0
    %1518 = vmatpush1.msra.mxu0 0.0
    %1519 = vmatprep.subr.mxu0 0.0
    %1520 = vmatpush1.msra.mxu0 0.0
    %1521 = vmatprep.subr.mxu0 0.0
    %1522 = vmatpush1.msra.mxu0 0.0
    %1523 = vmatprep.subr.mxu0 0.0
    %1524 = vmatpush1.msra.mxu0 0.0
    %1525 = vmatprep.subr.mxu0 0.0
    %1526 = vmatpush1.msra.mxu0 0.0
    %1527 = vmatprep.subr.mxu0 0.0
    %1528 = vmatpush1.msra.mxu0 0.0
    %1529 = vmatprep.subr.mxu0 0.0
    %1530 = vmatpush1.msra.mxu0 0.0
    %1531 = vmatprep.mubr.f32.mxu0 0.0
    %1532 = vmatmul.mubr.f32.gmra.mrb[0].mxu0 %v1395
    %v1533 = vpop.f32.mrb[0].mxu0
    %v1534 = vadd.f32 0.0, %v1533
    %v1535 = vpop.f32.mrb[0].mxu0
    %v1536 = vadd.f32 0.0, %v1535
    %1537 = vdwg.mxu0
    %v1542 = vrot.slane %v1463, 6
    %v1543 = vrot.slane %v1465, 6
    %v1544 = vrot.slane %v1534, 6
    %v1545 = vrot.slane %v1536, 6
    %v1550 = vadd.f32 %v344, %v1542
    %v1551 = vadd.f32 %v346, %v1543
    %v1552 = vadd.f32 %v421, %v1544
    %v1553 = vadd.f32 %v423, %v1545
    %v1554 = vxor.u32 %v1550, 2147483648
    %v1555 = vxor.u32 %v1551, 2147483648
    %v1556 = vxor.u32 %v1552, 2147483648
    %v1557 = vmul.f32 %v1554, 1.442695
    %v1558 = vpow.pop %v1557
    %v1559 = vmul.f32 %v1555, 1.442695
    %v1560 = vpow.pop %v1559
    %v1561 = vmul.f32 %v1556, 1.442695
    %v1562 = vpow.pop %v1561
    %v1563 = vadd.f32 %v1558, 1.0
    %v1564 = vadd.f32 %v1560, 1.0
    %v1565 = vadd.f32 %v1562, 1.0
    %v1566 = vrcp.pop %v1563
    %v1567 = vmul.f32 1.0, %v1566
    %v1568 = vrcp.pop %v1564
    %v1569 = vmul.f32 1.0, %v1568
    %v1570 = vrcp.pop %v1565
    %v1571 = vmul.f32 1.0, %v1570
    %v1572 = vtanh.pop %v1553
    %v1574 = vrot.slane %v1393, 6
    %v1576 = vmul.f32 %v1569, %v1574
    %v1577 = vmul.f32 %v1567, %v1572
    %v1578 = vadd.f32 %v1576, %v1577
    %v1579 = vtanh.pop %v1578
    %v1580 = vmul.f32 %v1571, %v1579
    %v1582 = vrot.slane %v1580, 2
    %1584 = vmatprep.subr.mxu0 %v426
    %1585 = vmatpush1.msra.mxu0 %v425
    %1586 = vmatprep.subr.mxu0 %v430
    %1587 = vmatpush1.msra.mxu0 %v429
    %1588 = vmatprep.subr.mxu0 %v434
    %1589 = vmatpush1.msra.mxu0 %v433
    %1590 = vmatprep.subr.mxu0 %v438
    %1591 = vmatpush1.msra.mxu0 %v437
    %1592 = vmatprep.subr.mxu0 %v442
    %1593 = vmatpush1.msra.mxu0 %v441
    %1594 = vmatprep.subr.mxu0 %v446
    %1595 = vmatpush1.msra.mxu0 %v445
    %1596 = vmatprep.subr.mxu0 %v450
    %1597 = vmatpush1.msra.mxu0 %v449
    %1598 = vmatprep.subr.mxu0 %v454
    %1599 = vmatpush1.msra.mxu0 %v453
    %1600 = vmatprep.subr.mxu0 %v458
    %1601 = vmatpush1.msra.mxu0 %v457
    %1602 = vmatprep.subr.mxu0 %v462
    %1603 = vmatpush1.msra.mxu0 %v461
    %1604 = vmatprep.subr.mxu0 %v466
    %1605 = vmatpush1.msra.mxu0 %v465
    %1606 = vmatprep.subr.mxu0 %v470
    %1607 = vmatpush1.msra.mxu0 %v469
    %1608 = vmatprep.subr.mxu0 %v474
    %1609 = vmatpush1.msra.mxu0 %v473
    %1610 = vmatprep.subr.mxu0 %v478
    %1611 = vmatpush1.msra.mxu0 %v477
    %1612 = vmatprep.subr.mxu0 %v482
    %1613 = vmatpush1.msra.mxu0 %v481
    %1614 = vmatprep.subr.mxu0 %v486
    %1615 = vmatpush1.msra.mxu0 %v485
    %1616 = vmatprep.subr.mxu0 0.0
    %1617 = vmatpush1.msra.mxu0 0.0
    %1618 = vmatprep.subr.mxu0 0.0
    %1619 = vmatpush1.msra.mxu0 0.0
    %1620 = vmatprep.subr.mxu0 0.0
    %1621 = vmatpush1.msra.mxu0 0.0
    %1622 = vmatprep.subr.mxu0 0.0
    %1623 = vmatpush1.msra.mxu0 0.0
    %1624 = vmatprep.subr.mxu0 0.0
    %1625 = vmatpush1.msra.mxu0 0.0
    %1626 = vmatprep.subr.mxu0 0.0
    %1627 = vmatpush1.msra.mxu0 0.0
    %1628 = vmatprep.subr.mxu0 0.0
    %1629 = vmatpush1.msra.mxu0 0.0
    %1630 = vmatprep.subr.mxu0 0.0
    %1631 = vmatpush1.msra.mxu0 0.0
    %1632 = vmatprep.subr.mxu0 0.0
    %1633 = vmatpush1.msra.mxu0 0.0
    %1634 = vmatprep.subr.mxu0 0.0
    %1635 = vmatpush1.msra.mxu0 0.0
    %1636 = vmatprep.subr.mxu0 0.0
    %1637 = vmatpush1.msra.mxu0 0.0
    %1638 = vmatprep.subr.mxu0 0.0
    %1639 = vmatpush1.msra.mxu0 0.0
    %1640 = vmatprep.subr.mxu0 0.0
    %1641 = vmatpush1.msra.mxu0 0.0
    %1642 = vmatprep.subr.mxu0 0.0
    %1643 = vmatpush1.msra.mxu0 0.0
    %1644 = vmatprep.subr.mxu0 0.0
    %1645 = vmatpush1.msra.mxu0 0.0
    %1646 = vmatprep.subr.mxu0 0.0
    %1647 = vmatpush1.msra.mxu0 0.0
    %1648 = vmatprep.mubr.f32.mxu0 0.0
    %1649 = vmatmul.mubr.f32.gmra.mrb[0].mxu0 %v1582
    %v1650 = vpop.f32.mrb[0].mxu0
    %v1651 = vadd.f32 0.0, %v1650
    %v1652 = vpop.f32.mrb[0].mxu0
    %v1653 = vadd.f32 0.0, %v1652
    %1654 = vdwg.mxu0
    %1655 = vmatprep.subr.mxu0 %v428
    %1656 = vmatpush1.msra.mxu0 %v427
    %1657 = vmatprep.subr.mxu0 %v432
    %1658 = vmatpush1.msra.mxu0 %v431
    %1659 = vmatprep.subr.mxu0 %v436
    %1660 = vmatpush1.msra.mxu0 %v435
    %1661 = vmatprep.subr.mxu0 %v440
    %1662 = vmatpush1.msra.mxu0 %v439
    %1663 = vmatprep.subr.mxu0 %v444
    %1664 = vmatpush1.msra.mxu0 %v443
    %1665 = vmatprep.subr.mxu0 %v448
    %1666 = vmatpush1.msra.mxu0 %v447
    %1667 = vmatprep.subr.mxu0 %v452
    %1668 = vmatpush1.msra.mxu0 %v451
    %1669 = vmatprep.subr.mxu0 %v456
    %1670 = vmatpush1.msra.mxu0 %v455
    %1671 = vmatprep.subr.mxu0 %v460
    %1672 = vmatpush1.msra.mxu0 %v459
    %1673 = vmatprep.subr.mxu0 %v464
    %1674 = vmatpush1.msra.mxu0 %v463
    %1675 = vmatprep.subr.mxu0 %v468
    %1676 = vmatpush1.msra.mxu0 %v467
    %1677 = vmatprep.subr.mxu0 %v472
    %1678 = vmatpush1.msra.mxu0 %v471
    %1679 = vmatprep.subr.mxu0 %v476
    %1680 = vmatpush1.msra.mxu0 %v475
    %1681 = vmatprep.subr.mxu0 %v480
    %1682 = vmatpush1.msra.mxu0 %v479
    %1683 = vmatprep.subr.mxu0 %v484
    %1684 = vmatpush1.msra.mxu0 %v483
    %1685 = vmatprep.subr.mxu0 %v488
    %1686 = vmatpush1.msra.mxu0 %v487
    %1687 = vmatprep.subr.mxu0 0.0
    %1688 = vmatpush1.msra.mxu0 0.0
    %1689 = vmatprep.subr.mxu0 0.0
    %1690 = vmatpush1.msra.mxu0 0.0
    %1691 = vmatprep.subr.mxu0 0.0
    %1692 = vmatpush1.msra.mxu0 0.0
    %1693 = vmatprep.subr.mxu0 0.0
    %1694 = vmatpush1.msra.mxu0 0.0
    %1695 = vmatprep.subr.mxu0 0.0
    %1696 = vmatpush1.msra.mxu0 0.0
    %1697 = vmatprep.subr.mxu0 0.0
    %1698 = vmatpush1.msra.mxu0 0.0
    %1699 = vmatprep.subr.mxu0 0.0
    %1700 = vmatpush1.msra.mxu0 0.0
    %1701 = vmatprep.subr.mxu0 0.0
    %1702 = vmatpush1.msra.mxu0 0.0
    %1703 = vmatprep.subr.mxu0 0.0
    %1704 = vmatpush1.msra.mxu0 0.0
    %1705 = vmatprep.subr.mxu0 0.0
    %1706 = vmatpush1.msra.mxu0 0.0
    %1707 = vmatprep.subr.mxu0 0.0
    %1708 = vmatpush1.msra.mxu0 0.0
    %1709 = vmatprep.subr.mxu0 0.0
    %1710 = vmatpush1.msra.mxu0 0.0
    %1711 = vmatprep.subr.mxu0 0.0
    %1712 = vmatpush1.msra.mxu0 0.0
    %1713 = vmatprep.subr.mxu0 0.0
    %1714 = vmatpush1.msra.mxu0 0.0
    %1715 = vmatprep.subr.mxu0 0.0
    %1716 = vmatpush1.msra.mxu0 0.0
    %1717 = vmatprep.subr.mxu0 0.0
    %1718 = vmatpush1.msra.mxu0 0.0
    %1719 = vmatprep.mubr.f32.mxu0 0.0
    %1720 = vmatmul.mubr.f32.gmra.mrb[0].mxu0 %v1582
    %v1721 = vpop.f32.mrb[0].mxu0
    %v1722 = vadd.f32 0.0, %v1721
    %v1723 = vpop.f32.mrb[0].mxu0
    %v1724 = vadd.f32 0.0, %v1723
    %1725 = vdwg.mxu0
    %v1730 = vrot.slane %v1651, 4
    %v1731 = vrot.slane %v1653, 4
    %v1732 = vrot.slane %v1722, 4
    %v1733 = vrot.slane %v1724, 4
    %v1738 = vadd.f32 %v344, %v1730
    %v1739 = vadd.f32 %v346, %v1731
    %v1740 = vadd.f32 %v421, %v1732
    %v1741 = vadd.f32 %v423, %v1733
    %v1742 = vxor.u32 %v1738, 2147483648
    %v1743 = vxor.u32 %v1739, 2147483648
    %v1744 = vxor.u32 %v1740, 2147483648
    %v1745 = vmul.f32 %v1742, 1.442695
    %v1746 = vpow.pop %v1745
    %v1747 = vmul.f32 %v1743, 1.442695
    %v1748 = vpow.pop %v1747
    %v1749 = vmul.f32 %v1744, 1.442695
    %v1750 = vpow.pop %v1749
    %v1751 = vadd.f32 %v1746, 1.0
    %v1752 = vadd.f32 %v1748, 1.0
    %v1753 = vadd.f32 %v1750, 1.0
    %v1754 = vrcp.pop %v1751
    %v1755 = vmul.f32 1.0, %v1754
    %v1756 = vrcp.pop %v1752
    %v1757 = vmul.f32 1.0, %v1756
    %v1758 = vrcp.pop %v1753
    %v1759 = vmul.f32 1.0, %v1758
    %v1760 = vtanh.pop %v1741
    %v1762 = vrot.slane %v1578, 6
    %v1764 = vmul.f32 %v1757, %v1762
    %v1765 = vmul.f32 %v1755, %v1760
    %v1766 = vadd.f32 %v1764, %v1765
    %v1767 = vtanh.pop %v1766
    %v1768 = vmul.f32 %v1759, %v1767
    %v1770 = vrot.slane %v1768, 4
    %1772 = vmatprep.subr.mxu0 %v426
    %1773 = vmatpush1.msra.mxu0 %v425
    %1774 = vmatprep.subr.mxu0 %v430
    %1775 = vmatpush1.msra.mxu0 %v429
    %1776 = vmatprep.subr.mxu0 %v434
    %1777 = vmatpush1.msra.mxu0 %v433
    %1778 = vmatprep.subr.mxu0 %v438
    %1779 = vmatpush1.msra.mxu0 %v437
    %1780 = vmatprep.subr.mxu0 %v442
    %1781 = vmatpush1.msra.mxu0 %v441
    %1782 = vmatprep.subr.mxu0 %v446
    %1783 = vmatpush1.msra.mxu0 %v445
    %1784 = vmatprep.subr.mxu0 %v450
    %1785 = vmatpush1.msra.mxu0 %v449
    %1786 = vmatprep.subr.mxu0 %v454
    %1787 = vmatpush1.msra.mxu0 %v453
    %1788 = vmatprep.subr.mxu0 %v458
    %1789 = vmatpush1.msra.mxu0 %v457
    %1790 = vmatprep.subr.mxu0 %v462
    %1791 = vmatpush1.msra.mxu0 %v461
    %1792 = vmatprep.subr.mxu0 %v466
    %1793 = vmatpush1.msra.mxu0 %v465
    %1794 = vmatprep.subr.mxu0 %v470
    %1795 = vmatpush1.msra.mxu0 %v469
    %1796 = vmatprep.subr.mxu0 %v474
    %1797 = vmatpush1.msra.mxu0 %v473
    %1798 = vmatprep.subr.mxu0 %v478
    %1799 = vmatpush1.msra.mxu0 %v477
    %1800 = vmatprep.subr.mxu0 %v482
    %1801 = vmatpush1.msra.mxu0 %v481
    %1802 = vmatprep.subr.mxu0 %v486
    %1803 = vmatpush1.msra.mxu0 %v485
    %1804 = vmatprep.subr.mxu0 0.0
    %1805 = vmatpush1.msra.mxu0 0.0
    %1806 = vmatprep.subr.mxu0 0.0
    %1807 = vmatpush1.msra.mxu0 0.0
    %1808 = vmatprep.subr.mxu0 0.0
    %1809 = vmatpush1.msra.mxu0 0.0
    %1810 = vmatprep.subr.mxu0 0.0
    %1811 = vmatpush1.msra.mxu0 0.0
    %1812 = vmatprep.subr.mxu0 0.0
    %1813 = vmatpush1.msra.mxu0 0.0
    %1814 = vmatprep.subr.mxu0 0.0
    %1815 = vmatpush1.msra.mxu0 0.0
    %1816 = vmatprep.subr.mxu0 0.0
    %1817 = vmatpush1.msra.mxu0 0.0
    %1818 = vmatprep.subr.mxu0 0.0
    %1819 = vmatpush1.msra.mxu0 0.0
    %1820 = vmatprep.subr.mxu0 0.0
    %1821 = vmatpush1.msra.mxu0 0.0
    %1822 = vmatprep.subr.mxu0 0.0
    %1823 = vmatpush1.msra.mxu0 0.0
    %1824 = vmatprep.subr.mxu0 0.0
    %1825 = vmatpush1.msra.mxu0 0.0
    %1826 = vmatprep.subr.mxu0 0.0
    %1827 = vmatpush1.msra.mxu0 0.0
    %1828 = vmatprep.subr.mxu0 0.0
    %1829 = vmatpush1.msra.mxu0 0.0
    %1830 = vmatprep.subr.mxu0 0.0
    %1831 = vmatpush1.msra.mxu0 0.0
    %1832 = vmatprep.subr.mxu0 0.0
    %1833 = vmatpush1.msra.mxu0 0.0
    %1834 = vmatprep.subr.mxu0 0.0
    %1835 = vmatpush1.msra.mxu0 0.0
    %1836 = vmatprep.mubr.f32.mxu0 0.0
    %1837 = vmatmul.mubr.f32.gmra.mrb[0].mxu0 %v1770
    %v1838 = vpop.f32.mrb[0].mxu0
    %v1839 = vadd.f32 0.0, %v1838
    %v1840 = vpop.f32.mrb[0].mxu0
    %v1841 = vadd.f32 0.0, %v1840
    %1842 = vdwg.mxu0
    %1843 = vmatprep.subr.mxu0 %v428
    %1844 = vmatpush1.msra.mxu0 %v427
    %1845 = vmatprep.subr.mxu0 %v432
    %1846 = vmatpush1.msra.mxu0 %v431
    %1847 = vmatprep.subr.mxu0 %v436
    %1848 = vmatpush1.msra.mxu0 %v435
    %1849 = vmatprep.subr.mxu0 %v440
    %1850 = vmatpush1.msra.mxu0 %v439
    %1851 = vmatprep.subr.mxu0 %v444
    %1852 = vmatpush1.msra.mxu0 %v443
    %1853 = vmatprep.subr.mxu0 %v448
    %1854 = vmatpush1.msra.mxu0 %v447
    %1855 = vmatprep.subr.mxu0 %v452
    %1856 = vmatpush1.msra.mxu0 %v451
    %1857 = vmatprep.subr.mxu0 %v456
    %1858 = vmatpush1.msra.mxu0 %v455
    %1859 = vmatprep.subr.mxu0 %v460
    %1860 = vmatpush1.msra.mxu0 %v459
    %1861 = vmatprep.subr.mxu0 %v464
    %1862 = vmatpush1.msra.mxu0 %v463
    %1863 = vmatprep.subr.mxu0 %v468
    %1864 = vmatpush1.msra.mxu0 %v467
    %1865 = vmatprep.subr.mxu0 %v472
    %1866 = vmatpush1.msra.mxu0 %v471
    %1867 = vmatprep.subr.mxu0 %v476
    %1868 = vmatpush1.msra.mxu0 %v475
    %1869 = vmatprep.subr.mxu0 %v480
    %1870 = vmatpush1.msra.mxu0 %v479
    %1871 = vmatprep.subr.mxu0 %v484
    %1872 = vmatpush1.msra.mxu0 %v483
    %1873 = vmatprep.subr.mxu0 %v488
    %1874 = vmatpush1.msra.mxu0 %v487
    %1875 = vmatprep.subr.mxu0 0.0
    %1876 = vmatpush1.msra.mxu0 0.0
    %1877 = vmatprep.subr.mxu0 0.0
    %1878 = vmatpush1.msra.mxu0 0.0
    %1879 = vmatprep.subr.mxu0 0.0
    %1880 = vmatpush1.msra.mxu0 0.0
    %1881 = vmatprep.subr.mxu0 0.0
    %1882 = vmatpush1.msra.mxu0 0.0
    %1883 = vmatprep.subr.mxu0 0.0
    %1884 = vmatpush1.msra.mxu0 0.0
    %1885 = vmatprep.subr.mxu0 0.0
    %1886 = vmatpush1.msra.mxu0 0.0
    %1887 = vmatprep.subr.mxu0 0.0
    %1888 = vmatpush1.msra.mxu0 0.0
    %1889 = vmatprep.subr.mxu0 0.0
    %1890 = vmatpush1.msra.mxu0 0.0
    %1891 = vmatprep.subr.mxu0 0.0
    %1892 = vmatpush1.msra.mxu0 0.0
    %1893 = vmatprep.subr.mxu0 0.0
    %1894 = vmatpush1.msra.mxu0 0.0
    %1895 = vmatprep.subr.mxu0 0.0
    %1896 = vmatpush1.msra.mxu0 0.0
    %1897 = vmatprep.subr.mxu0 0.0
    %1898 = vmatpush1.msra.mxu0 0.0
    %1899 = vmatprep.subr.mxu0 0.0
    %1900 = vmatpush1.msra.mxu0 0.0
    %1901 = vmatprep.subr.mxu0 0.0
    %1902 = vmatpush1.msra.mxu0 0.0
    %1903 = vmatprep.subr.mxu0 0.0
    %1904 = vmatpush1.msra.mxu0 0.0
    %1905 = vmatprep.subr.mxu0 0.0
    %1906 = vmatpush1.msra.mxu0 0.0
    %1907 = vmatprep.mubr.f32.mxu0 0.0
    %1908 = vmatmul.mubr.f32.gmra.mrb[0].mxu0 %v1770
    %v1909 = vpop.f32.mrb[0].mxu0
    %v1910 = vadd.f32 0.0, %v1909
    %v1911 = vpop.f32.mrb[0].mxu0
    %v1912 = vadd.f32 0.0, %v1911
    %1913 = vdwg.mxu0
    %v1918 = vrot.slane %v1839, 2
    %v1919 = vrot.slane %v1841, 2
    %v1920 = vrot.slane %v1910, 2
    %v1921 = vrot.slane %v1912, 2
    %v1926 = vadd.f32 %v344, %v1918
    %v1927 = vadd.f32 %v346, %v1919
    %v1928 = vadd.f32 %v421, %v1920
    %v1929 = vadd.f32 %v423, %v1921
    %v1930 = vxor.u32 %v1926, 2147483648
    %v1931 = vxor.u32 %v1927, 2147483648
    %v1932 = vxor.u32 %v1928, 2147483648
    %v1933 = vmul.f32 %v1930, 1.442695
    %v1934 = vpow.pop %v1933
    %v1935 = vmul.f32 %v1931, 1.442695
    %v1936 = vpow.pop %v1935
    %v1937 = vmul.f32 %v1932, 1.442695
    %v1938 = vpow.pop %v1937
    %v1939 = vadd.f32 %v1934, 1.0
    %v1940 = vadd.f32 %v1936, 1.0
    %v1941 = vadd.f32 %v1938, 1.0
    %v1942 = vrcp.pop %v1939
    %v1943 = vmul.f32 1.0, %v1942
    %v1944 = vrcp.pop %v1940
    %v1945 = vmul.f32 1.0, %v1944
    %v1946 = vrcp.pop %v1941
    %v1947 = vmul.f32 1.0, %v1946
    %v1948 = vtanh.pop %v1929
    %v1950 = vrot.slane %v1766, 6
    %v1952 = vmul.f32 %v1945, %v1950
    %v1953 = vmul.f32 %v1943, %v1948
    %v1954 = vadd.f32 %v1952, %v1953
    %v1955 = vtanh.pop %v1954
    %v1956 = vmul.f32 %v1947, %v1955
    %v1957 = vld [vmem:[#allocation8] sm:$0xff]
    %v1958 = vld [vmem:[#allocation8 + $0x8] sm:$0xff]
    %v1959 = vld [vmem:[#allocation8 + $0x10] sm:$0xff]
    %v1960 = vld [vmem:[#allocation8 + $0x18] sm:$0xff]
    %v1961 = vld [vmem:[#allocation8 + $0x20] sm:$0xff]
    %v1962 = vld [vmem:[#allocation8 + $0x28] sm:$0xff]
    %v1963 = vld [vmem:[#allocation8 + $0x30] sm:$0xff]
    %v1964 = vld [vmem:[#allocation8 + $0x38] sm:$0xff]
    %v1965 = vld [vmem:[#allocation8 + $0x40] sm:$0xff]
    %v1966 = vld [vmem:[#allocation8 + $0x48] sm:$0xff]
    %v1967 = vld [vmem:[#allocation8 + $0x50] sm:$0xff]
    %v1968 = vld [vmem:[#allocation8 + $0x58] sm:$0xff]
    %v1969 = vld [vmem:[#allocation8 + $0x60] sm:$0xff]
    %v1970 = vld [vmem:[#allocation8 + $0x68] sm:$0xff]
    %v1971 = vld [vmem:[#allocation8 + $0x70] sm:$0xff]
    %v1972 = vld [vmem:[#allocation8 + $0x78] sm:$0xff]
    %v1973 = vld [vmem:[%s6] sm:$0x1]
    %v1975 = vlaneseq
    %v1976 = vshrl.u32 %v1975, 7
    %v1977 = vsub.s32 0, %v1976
    %v1978 = vrot.slane %v1973, %v1977
    %v1981 = vrot.slane %v1956, 6
    %1983 = vmatprep.subr.mxu0 0.0
    %1984 = vmatpush1.msra.mxu0 %v1957
    %1985 = vmatprep.subr.mxu0 0.0
    %1986 = vmatpush1.msra.mxu0 %v1958
    %1987 = vmatprep.subr.mxu0 0.0
    %1988 = vmatpush1.msra.mxu0 %v1959
    %1989 = vmatprep.subr.mxu0 0.0
    %1990 = vmatpush1.msra.mxu0 %v1960
    %1991 = vmatprep.subr.mxu0 0.0
    %1992 = vmatpush1.msra.mxu0 %v1961
    %1993 = vmatprep.subr.mxu0 0.0
    %1994 = vmatpush1.msra.mxu0 %v1962
    %1995 = vmatprep.subr.mxu0 0.0
    %1996 = vmatpush1.msra.mxu0 %v1963
    %1997 = vmatprep.subr.mxu0 0.0
    %1998 = vmatpush1.msra.mxu0 %v1964
    %1999 = vmatprep.subr.mxu0 0.0
    %2000 = vmatpush1.msra.mxu0 %v1965
    %2001 = vmatprep.subr.mxu0 0.0
    %2002 = vmatpush1.msra.mxu0 %v1966
    %2003 = vmatprep.subr.mxu0 0.0
    %2004 = vmatpush1.msra.mxu0 %v1967
    %2005 = vmatprep.subr.mxu0 0.0
    %2006 = vmatpush1.msra.mxu0 %v1968
    %2007 = vmatprep.subr.mxu0 0.0
    %2008 = vmatpush1.msra.mxu0 %v1969
    %2009 = vmatprep.subr.mxu0 0.0
    %2010 = vmatpush1.msra.mxu0 %v1970
    %2011 = vmatprep.subr.mxu0 0.0
    %2012 = vmatpush1.msra.mxu0 %v1971
    %2013 = vmatprep.subr.mxu0 0.0
    %2014 = vmatpush1.msra.mxu0 %v1972
    %2015 = vmatprep.subr.mxu0 0.0
    %2016 = vmatpush1.msra.mxu0 0.0
    %2017 = vmatprep.subr.mxu0 0.0
    %2018 = vmatpush1.msra.mxu0 0.0
    %2019 = vmatprep.subr.mxu0 0.0
    %2020 = vmatpush1.msra.mxu0 0.0
    %2021 = vmatprep.subr.mxu0 0.0
    %2022 = vmatpush1.msra.mxu0 0.0
    %2023 = vmatprep.subr.mxu0 0.0
    %2024 = vmatpush1.msra.mxu0 0.0
    %2025 = vmatprep.subr.mxu0 0.0
    %2026 = vmatpush1.msra.mxu0 0.0
    %2027 = vmatprep.subr.mxu0 0.0
    %2028 = vmatpush1.msra.mxu0 0.0
    %2029 = vmatprep.subr.mxu0 0.0
    %2030 = vmatpush1.msra.mxu0 0.0
    %2031 = vmatprep.subr.mxu0 0.0
    %2032 = vmatpush1.msra.mxu0 0.0
    %2033 = vmatprep.subr.mxu0 0.0
    %2034 = vmatpush1.msra.mxu0 0.0
    %2035 = vmatprep.subr.mxu0 0.0
    %2036 = vmatpush1.msra.mxu0 0.0
    %2037 = vmatprep.subr.mxu0 0.0
    %2038 = vmatpush1.msra.mxu0 0.0
    %2039 = vmatprep.subr.mxu0 0.0
    %2040 = vmatpush1.msra.mxu0 0.0
    %2041 = vmatprep.subr.mxu0 0.0
    %2042 = vmatpush1.msra.mxu0 0.0
    %2043 = vmatprep.subr.mxu0 0.0
    %2044 = vmatpush1.msra.mxu0 0.0
    %2045 = vmatprep.subr.mxu0 0.0
    %2046 = vmatpush1.msra.mxu0 0.0
    %2047 = vmatprep.mubr.f32.mxu0 0.0
    %2048 = vmatmul.mubr.f32.gmra.mrb[0].mxu0 %v1981
    %v2049 = vpop.f32.mrb[0].mxu0
    %v2050 = vadd.f32 %v1978, %v2049
    %v2051 = vpop.f32.mrb[0].mxu0
    %2052 = vdwg.mxu0
    %v2053 = vmax.f32 %v2050, 0.0
    %v2054 = vld [vmem:[#allocation10] sm:$0xff]
    %v2055 = vld [vmem:[#allocation10 + $0x8] sm:$0xff]
    %v2056 = vld [vmem:[#allocation10 + $0x10] sm:$0xff]
    %v2057 = vld [vmem:[#allocation10 + $0x18] sm:$0xff]
    %v2058 = vld [vmem:[#allocation10 + $0x20] sm:$0xff]
    %v2059 = vld [vmem:[#allocation10 + $0x28] sm:$0xff]
    %v2060 = vld [vmem:[#allocation10 + $0x30] sm:$0xff]
    %v2061 = vld [vmem:[#allocation10 + $0x38] sm:$0xff]
    %v2062 = vld [vmem:[#allocation10 + $0x40] sm:$0xff]
    %v2063 = vld [vmem:[#allocation10 + $0x48] sm:$0xff]
    %v2064 = vld [vmem:[#allocation10 + $0x50] sm:$0xff]
    %v2065 = vld [vmem:[#allocation10 + $0x58] sm:$0xff]
    %v2066 = vld [vmem:[#allocation10 + $0x60] sm:$0xff]
    %v2067 = vld [vmem:[#allocation10 + $0x68] sm:$0xff]
    %v2068 = vld [vmem:[#allocation10 + $0x70] sm:$0xff]
    %v2069 = vld [vmem:[#allocation10 + $0x78] sm:$0xff]
    %v2070 = vld [vmem:[%s8] sm:$0x1]
    %v2072 = vlaneseq
    %v2073 = vshrl.u32 %v2072, 7
    %v2074 = vsub.s32 0, %v2073
    %v2075 = vrot.slane %v2070, %v2074
    %2077 = vmatprep.subr.mxu0 0.0
    %2078 = vmatpush1.msra.mxu0 %v2054
    %2079 = vmatprep.subr.mxu0 0.0
    %2080 = vmatpush1.msra.mxu0 %v2055
    %2081 = vmatprep.subr.mxu0 0.0
    %2082 = vmatpush1.msra.mxu0 %v2056
    %2083 = vmatprep.subr.mxu0 0.0
    %2084 = vmatpush1.msra.mxu0 %v2057
    %2085 = vmatprep.subr.mxu0 0.0
    %2086 = vmatpush1.msra.mxu0 %v2058
    %2087 = vmatprep.subr.mxu0 0.0
    %2088 = vmatpush1.msra.mxu0 %v2059
    %2089 = vmatprep.subr.mxu0 0.0
    %2090 = vmatpush1.msra.mxu0 %v2060
    %2091 = vmatprep.subr.mxu0 0.0
    %2092 = vmatpush1.msra.mxu0 %v2061
    %2093 = vmatprep.subr.mxu0 0.0
    %2094 = vmatpush1.msra.mxu0 %v2062
    %2095 = vmatprep.subr.mxu0 0.0
    %2096 = vmatpush1.msra.mxu0 %v2063
    %2097 = vmatprep.subr.mxu0 0.0
    %2098 = vmatpush1.msra.mxu0 %v2064
    %2099 = vmatprep.subr.mxu0 0.0
    %2100 = vmatpush1.msra.mxu0 %v2065
    %2101 = vmatprep.subr.mxu0 0.0
    %2102 = vmatpush1.msra.mxu0 %v2066
    %2103 = vmatprep.subr.mxu0 0.0
    %2104 = vmatpush1.msra.mxu0 %v2067
    %2105 = vmatprep.subr.mxu0 0.0
    %2106 = vmatpush1.msra.mxu0 %v2068
    %2107 = vmatprep.subr.mxu0 0.0
    %2108 = vmatpush1.msra.mxu0 %v2069
    %2109 = vmatprep.subr.mxu0 0.0
    %2110 = vmatpush1.msra.mxu0 0.0
    %2111 = vmatprep.subr.mxu0 0.0
    %2112 = vmatpush1.msra.mxu0 0.0
    %2113 = vmatprep.subr.mxu0 0.0
    %2114 = vmatpush1.msra.mxu0 0.0
    %2115 = vmatprep.subr.mxu0 0.0
    %2116 = vmatpush1.msra.mxu0 0.0
    %2117 = vmatprep.subr.mxu0 0.0
    %2118 = vmatpush1.msra.mxu0 0.0
    %2119 = vmatprep.subr.mxu0 0.0
    %2120 = vmatpush1.msra.mxu0 0.0
    %2121 = vmatprep.subr.mxu0 0.0
    %2122 = vmatpush1.msra.mxu0 0.0
    %2123 = vmatprep.subr.mxu0 0.0
    %2124 = vmatpush1.msra.mxu0 0.0
    %2125 = vmatprep.subr.mxu0 0.0
    %2126 = vmatpush1.msra.mxu0 0.0
    %2127 = vmatprep.subr.mxu0 0.0
    %2128 = vmatpush1.msra.mxu0 0.0
    %2129 = vmatprep.subr.mxu0 0.0
    %2130 = vmatpush1.msra.mxu0 0.0
    %2131 = vmatprep.subr.mxu0 0.0
    %2132 = vmatpush1.msra.mxu0 0.0
    %2133 = vmatprep.subr.mxu0 0.0
    %2134 = vmatpush1.msra.mxu0 0.0
    %2135 = vmatprep.subr.mxu0 0.0
    %2136 = vmatpush1.msra.mxu0 0.0
    %2137 = vmatprep.subr.mxu0 0.0
    %2138 = vmatpush1.msra.mxu0 0.0
    %2139 = vmatprep.subr.mxu0 0.0
    %2140 = vmatpush1.msra.mxu0 0.0
    %2141 = vmatprep.mubr.f32.mxu0 0.0
    %2142 = vmatmul.mubr.f32.gmra.mrb[0].mxu0 %v2053
    %v2143 = vpop.f32.mrb[0].mxu0
    %v2144 = vadd.f32 %v2075, %v2143
    %v2145 = vpop.f32.mrb[0].mxu0
    %2146 = vdwg.mxu0
    %2147 = vst [vmem:[#allocation11] sm:$0x3] %v2144
    // Predicated region
    $region58: #{tpu_custom_call.1} parent=1 // pred_check
      _
    $region59: #{tpu_custom_call.1} parent=1 // pred_check_branch
      %2149 = sbr.rel (0) target = $region61
    $region60: #{tpu_custom_call.1} parent=1 // pred_region
      %s2151 = ssub.s32 32, 32
      %2152 = vsyncadd [#allocation4], %s2151
      %s2154 = sshll.u32 [#allocation11], 4
      %s2155 = int_to_ptr.vmem [resolvable:$true] %s2154
      %2157 = dma.vmem_to_hbm [thread:$0]  %s2155, 32, %s9, [#allocation4]
    $region61: #{tpu_custom_call.1} parent=1 // pred_fallthru
      _
    // Predicated region
    $region62: #{tpu_custom_call.1} parent=1 // pred_check
      _
    $region63: #{tpu_custom_call.1} parent=1 // pred_check_branch
      %2159 = sbr.rel (0) target = $region65
    $region64: #{tpu_custom_call.1} parent=1 // pred_region
      %2160 = dma.done [#allocation4], 32
    $region65: #{tpu_custom_call.1} parent=1 // pred_fallthru
      _
    %2161 = vsyncpa [#allocation3], 1
    %2162 = vsyncpa [#allocation6], 1
    %2163 = vsyncpa [#allocation9], 1
    %2164 = vsyncpa [#allocation4], 1

</llo_original>
